<compile_context>
chip_gen: v7x
topology: tpu7x:2x2x1
jax: 0.10.0
libtpu: 0.0.40
codegen_flags: <defaults>
</compile_context>

<pallas_src>
import functools
import math

import jax
import jax.numpy as jnp
from jax import lax
from jax.experimental import pallas as pl
from jax.experimental.pallas import tpu as pltpu

NEG_BIG = -9.0e15   # masked-fill value used by the PyTorch module


def _row_softmax(logits):
    m = jnp.max(logits, axis=-1, keepdims=True)
    e = jnp.exp(logits - m)
    denom = jnp.sum(e, axis=-1, keepdims=True)
    # approx reciprocal runs on the EUP (otherwise idle between the exp calls)
    # instead of burning VALU slots on an f32 divide.
    return e * pl.reciprocal(denom, approx=True)


def multiview_gnn_kernel(
    adj_ref,     # (V, N, N)
    x_ref,       # (N, F)
    w_gat_ref,   # (F, Hg)      GAT W (torch stores it (in, out))
    w_qkv_ref,   # (Hg, 3*Hg)   qkv_proj.weight.T  == [Wq^T | Wk^T | Wv^T]
    w_of_ref,    # (2, Hg, Hg)  [o_proj.weight.T, linear_fusion.weight.T]
    vec_ref,     # (8, 3*Hg)    row0=[a1|a2|0]  row1=b_qkv  row2=[b_o|b_fus|0]
    fusion_ref,  # (N - 2*node_num, Hg)   output 0
    views_ref,   # (V, N, Hg)             output 1
    *, num_views, node_num, hidden, alpha_gat, alpha_fusion, beta_fusion,
):
    V = num_views
    Hg = hidden
    N = x_ref.shape[0]
    VN = V * N
    inv_sqrt_d = 1.0 / math.sqrt(Hg)

    x = x_ref[...]
    vec = vec_ref[...]
    a1 = vec[0:1, 0:Hg]            # (1, Hg)
    a2 = vec[0:1, Hg:2 * Hg]       # (1, Hg)
    b_qkv = vec[1:2, :]            # (1, 3*Hg)
    b_o = vec[2:3, 0:Hg]           # (1, Hg)
    b_f = vec[2:3, Hg:2 * Hg]      # (1, Hg)

    # ---- View-invariant GAT pieces (only the adjacency mask differs per view).
    Wh = jnp.dot(x, w_gat_ref[...], preferred_element_type=jnp.float32)       # (N, Hg)
    wh1_col = jnp.sum(Wh * a1, axis=-1, keepdims=True)                        # (N, 1)
    wh2_row = lax.dot_general(a2, Wh, (((1,), (1,)), ((), ())),
                              preferred_element_type=jnp.float32)             # (1, N)
    e = wh1_col + wh2_row                                                     # (N, N)
    e = jnp.where(e > 0.0, e, alpha_gat * e)                                  # LeakyReLU

    # ---- GAT attention + aggregation for all views at once.
    masked = jnp.where(adj_ref[...] > 0.0, e[None, :, :], NEG_BIG)            # (V, N, N)
    att = _row_softmax(masked.reshape(VN, N))                                 # (VN, N)
    h_prime = jnp.dot(att, Wh, preferred_element_type=jnp.float32)            # (VN, Hg)
    h_gat = jnp.where(h_prime > 0.0, h_prime, jnp.exp(h_prime) - 1.0)         # ELU

    # ---- Single-head self-attention over nodes; projections batched over views.
    qkv = jnp.dot(h_gat, w_qkv_ref[...],
                  preferred_element_type=jnp.float32) + b_qkv                 # (VN, 3Hg)
    q = qkv[:, 0:Hg].reshape(V, N, Hg)
    k = qkv[:, Hg:2 * Hg].reshape(V, N, Hg)
    v = qkv[:, 2 * Hg:3 * Hg].reshape(V, N, Hg)

    sc = jnp.einsum('bqd,bkd->bqk', q, k,
                    preferred_element_type=jnp.float32) * inv_sqrt_d          # (V, N, N)
    attn = _row_softmax(sc)                                                   # (V, N, N)
    vals = jnp.einsum('bqk,bkd->bqd', attn, v,
                      preferred_element_type=jnp.float32).reshape(VN, Hg)     # (VN, Hg)
    o = jnp.dot(vals, w_of_ref[0], preferred_element_type=jnp.float32) + b_o  # (VN, Hg)

    # ---- Gated multi-view fusion: one fused elementwise pass over all views.
    hf = alpha_fusion * o + (1.0 - alpha_fusion) * h_gat                      # (VN, Hg)
    gate = jax.nn.sigmoid(
        jnp.dot(hf, w_of_ref[1], preferred_element_type=jnp.float32) + b_f)
    hid = gate * hf
    views_ref[...] = (beta_fusion * hid + (1.0 - beta_fusion) * hf).reshape(V, N, Hg)

    # Only the tail rows are returned -> accumulate just those (V adds of (n_tail, Hg)).
    hid3 = hid.reshape(V, N, Hg)
    off = 2 * node_num
    acc = hid3[0, off:, :]
    for view in range(1, V):
        acc = acc + hid3[view, off:, :]
    fusion_ref[...] = acc


def multiview_gnn(all_adj, node_feat, params, *,
                  alpha_gat=0.2, alpha_fusion=0.8, beta_fusion=0.5):
    V, N, _ = all_adj.shape
    Hg = params["w_gat"].shape[1]
    node_num = round(N / 3)          # mirrors the module: round(node_feat.shape[0] / 3)
    n_tail = N - 2 * node_num
    f32 = jnp.float32

    a = params["a"].reshape(-1).astype(f32)                   # (2*Hg,)
    # torch Linear computes x @ W^T + b -> pre-transpose once in the wrapper.
    w_qkv = params["w_qkv"].T.astype(f32)                     # (Hg, 3*Hg) = [Wq^T|Wk^T|Wv^T]
    w_of = jnp.stack([params["w_o"].T.astype(f32),
                      params["w_fus"].T.astype(f32)])         # (2, Hg, Hg)

    # Pack all (1, Hg)-sized vectors into a single (8, 3*Hg) slab (one DMA).
    vec = jnp.zeros((8, 3 * Hg), f32)
    vec = vec.at[0, :2 * Hg].set(a)
    vec = vec.at[1, :].set(params["b_qkv"].reshape(-1).astype(f32))
    vec = vec.at[2, :Hg].set(params["b_o"].reshape(-1).astype(f32))
    vec = vec.at[2, Hg:2 * Hg].set(params["b_fus"].reshape(-1).astype(f32))

    args = (
        all_adj.astype(f32),
        node_feat.astype(f32),
        params["w_gat"].astype(f32),
        w_qkv,
        w_of,
        vec,
    )

    kernel = functools.partial(
        multiview_gnn_kernel, num_views=V, node_num=node_num, hidden=Hg,
        alpha_gat=alpha_gat, alpha_fusion=alpha_fusion, beta_fusion=beta_fusion)

    return pl.pallas_call(
        kernel,
        out_shape=(jax.ShapeDtypeStruct((n_tail, Hg), f32),   # fusion_hidden slice
                   jax.ShapeDtypeStruct((V, N, Hg), f32)),    # view_hidden_final
        in_specs=[pl.BlockSpec(memory_space=pltpu.MemorySpace.VMEM)] * len(args),
        out_specs=(pl.BlockSpec(memory_space=pltpu.MemorySpace.VMEM),
                   pl.BlockSpec(memory_space=pltpu.MemorySpace.VMEM)),
    )(*args)


# ---------------- pure-JAX reference (mirrors the PyTorch forward, eval mode) --
def reference(all_adj, node_feat, params, alpha_gat, alpha_fusion, beta_fusion):
    Hg = params["w_gat"].shape[1]
    N = node_feat.shape[0]
    node_num = round(N / 3)
    a = params["a"]                                             # (2*Hg, 1)

    def gat(h, adj):
        Wh = h @ params["w_gat"]
        wh1 = Wh @ a[:Hg, :]
        wh2 = Wh @ a[Hg:, :]
        e = wh1 + wh2.T
        e = jnp.where(e > 0, e, alpha_gat * e)                  # LeakyReLU
        att = jnp.where(adj > 0, e, NEG_BIG)
        att = jax.nn.softmax(att, axis=1)
        hp = att @ Wh
        return jnp.where(hp > 0, hp, jnp.exp(hp) - 1.0)         # ELU (concat=True)

    def mha(h):                                                 # num_heads = 1
        qkv = h @ params["w_qkv"].T + params["b_qkv"]
        q, k, v = qkv[:, :Hg], qkv[:, Hg:2 * Hg], qkv[:, 2 * Hg:]
        logits = (q @ k.T) / math.sqrt(Hg)
        attn = jax.nn.softmax(logits, axis=-1)
        return (attn @ v) @ params["w_o"].T + params["b_o"]

    hidden_gat = [gat(node_feat, all_adj[i]) for i in range(all_adj.shape[0])]
    hidden_att = [mha(h) for h in hidden_gat]

    fusion = jnp.zeros((N, Hg), jnp.float32)
    views = []
    for h_att, h_gat in zip(hidden_att, hidden_gat):
        hf = alpha_fusion * h_att + (1.0 - alpha_fusion) * h_gat
        w = jax.nn.sigmoid(hf @ params["w_fus"].T + params["b_fus"])
        hid = w * hf
        fusion = fusion + hid
        views.append(beta_fusion * hid + (1.0 - beta_fusion) * hf)
    return fusion[2 * node_num:, :], jnp.stack(views)


if __name__ == "__main__":
    NUM_VIEWS, NODE_NUM, IN_FEATURES, GAT_HIDDEN = 3, 8, 16, 32
    N = 3 * NODE_NUM                       # node_feat stacks 3 views' worth of nodes
    ALPHA_GAT, ALPHA_FUSION, BETA_FUSION = 0.2, 0.8, 0.5

    key = jax.random.PRNGKey(0)
    ks = jax.random.split(key, 8)

    def xavier(k, shape, gain=1.414):
        bound = gain * math.sqrt(6.0 / (shape[0] + shape[1]))
        return jax.random.uniform(k, shape, jnp.float32, -bound, bound)

    bnd = 1.0 / math.sqrt(GAT_HIDDEN)
    params = dict(
        # GraphAttentionLayer
        w_gat=xavier(ks[0], (IN_FEATURES, GAT_HIDDEN)),
        a=xavier(ks[1], (2 * GAT_HIDDEN, 1)),
        # MultiheadAttention (num_heads=1)
        w_qkv=xavier(ks[2], (3 * GAT_HIDDEN, GAT_HIDDEN), gain=1.0),
        b_qkv=jnp.zeros((3 * GAT_HIDDEN,), jnp.float32),
        w_o=xavier(ks[3], (GAT_HIDDEN, GAT_HIDDEN), gain=1.0),
        b_o=jnp.zeros((GAT_HIDDEN,), jnp.float32),
        # linear_fusion
        w_fus=jax.random.uniform(ks[4], (GAT_HIDDEN, GAT_HIDDEN), jnp.float32, -bnd, bnd),
        b_fus=jax.random.uniform(ks[5], (GAT_HIDDEN,), jnp.float32, -bnd, bnd),
    )

    node_feat = jax.random.normal(ks[6], (N, IN_FEATURES), jnp.float32)
    adj = (jax.random.uniform(ks[7], (NUM_VIEWS, N, N)) > 0.5).astype(jnp.float32)
    all_adj = jnp.maximum(adj, jnp.eye(N, dtype=jnp.float32)[None])   # add self loops

    fusion, views = multiview_gnn(all_adj, node_feat, params,
                                  alpha_gat=ALPHA_GAT,
                                  alpha_fusion=ALPHA_FUSION,
                                  beta_fusion=BETA_FUSION)
    fusion = jax.block_until_ready(fusion)
    views = jax.block_until_ready(views)

    fusion_exp, views_exp = reference(all_adj, node_feat, params,
                                      ALPHA_GAT, ALPHA_FUSION, BETA_FUSION)

    assert fusion.shape == (N - 2 * NODE_NUM, GAT_HIDDEN), fusion.shape
    assert views.shape == (NUM_VIEWS, N, GAT_HIDDEN), views.shape
    # Tolerance 5e-3: the kernel uses pl.reciprocal(approx=True) (~12-bit) for
    # the softmax denominators; any semantic bug would produce O(0.1 - 1) errors.
    assert jnp.allclose(fusion, fusion_exp, atol=5e-3, rtol=5e-3), \
        float(jnp.max(jnp.abs(fusion - fusion_exp)))
    assert jnp.allclose(views, views_exp, atol=5e-3, rtol=5e-3), \
        float(jnp.max(jnp.abs(views - views_exp)))

    print("KERNEL_OK")
</pallas_src>

<mosaic_0001>
module attributes {stable_mosaic.version = 11 : i64} {
  func.func @multiview_gnn_kernel(%arg0: memref<3x24x24xf32, #tpu.memory_space<vmem>>, %arg1: memref<24x16xf32, #tpu.memory_space<vmem>>, %arg2: memref<16x32xf32, #tpu.memory_space<vmem>>, %arg3: memref<32x96xf32, #tpu.memory_space<vmem>>, %arg4: memref<2x32x32xf32, #tpu.memory_space<vmem>>, %arg5: memref<8x96xf32, #tpu.memory_space<vmem>>, %arg6: memref<8x32xf32, #tpu.memory_space<vmem>>, %arg7: memref<3x24x32xf32, #tpu.memory_space<vmem>>) attributes {dimension_semantics = [], scalar_prefetch = 0 : i64, scratch_operands = 0 : i64, tpu.core_type = #tpu.core_type<tc>} {
    %c0 = arith.constant 0 : index
    %c0_0 = arith.constant 0 : index
    %0 = vector.load %arg1[%c0, %c0_0] : memref<24x16xf32, #tpu.memory_space<vmem>>, vector<24x16xf32>
    %c0_1 = arith.constant 0 : index
    %c0_2 = arith.constant 0 : index
    %1 = vector.load %arg5[%c0_1, %c0_2] : memref<8x96xf32, #tpu.memory_space<vmem>>, vector<8x96xf32>
    %2 = vector.extract_strided_slice %1 {offsets = [0, 0], sizes = [1, 32], strides = [1, 1]} : vector<8x96xf32> to vector<1x32xf32>
    %3 = vector.extract_strided_slice %1 {offsets = [0, 32], sizes = [1, 32], strides = [1, 1]} : vector<8x96xf32> to vector<1x32xf32>
    %4 = vector.extract_strided_slice %1 {offsets = [1, 0], sizes = [1, 96], strides = [1, 1]} : vector<8x96xf32> to vector<1x96xf32>
    %5 = vector.extract_strided_slice %1 {offsets = [2, 0], sizes = [1, 32], strides = [1, 1]} : vector<8x96xf32> to vector<1x32xf32>
    %6 = vector.extract_strided_slice %1 {offsets = [2, 32], sizes = [1, 32], strides = [1, 1]} : vector<8x96xf32> to vector<1x32xf32>
    %c0_3 = arith.constant 0 : index
    %c0_4 = arith.constant 0 : index
    %7 = vector.load %arg2[%c0_3, %c0_4] : memref<16x32xf32, #tpu.memory_space<vmem>>, vector<16x32xf32>
    %cst = arith.constant dense<0.000000e+00> : vector<24x32xf32>
    %8 = tpu.matmul %0, %7, %cst {dimension_numbers = #tpu.dot_dimension_numbers<[1], [0], [0], [1], [0, 0, 1, 1], [], []>} : vector<24x16xf32>, vector<16x32xf32>, vector<24x32xf32> -> vector<24x32xf32>
    %9 = vector.broadcast %2 : vector<1x32xf32> to vector<24x32xf32>
    %10 = arith.mulf %8, %9 : vector<24x32xf32>
    %cst_5 = arith.constant dense<0.000000e+00> : vector<24xf32>
    %11 = vector.multi_reduction <add>, %10, %cst_5 [1] : vector<24x32xf32> to vector<24xf32>
    %12 = vector.shape_cast %11 : vector<24xf32> to vector<24x1xf32>
    %cst_6 = arith.constant dense<0.000000e+00> : vector<1x24xf32>
    %13 = tpu.matmul %3, %8, %cst_6 {dimension_numbers = #tpu.dot_dimension_numbers<[1], [1], [0], [0], [0, 0, 1, 0], [], []>} : vector<1x32xf32>, vector<24x32xf32>, vector<1x24xf32> -> vector<1x24xf32>
    %14 = vector.broadcast %12 : vector<24x1xf32> to vector<24x24xf32>
    %15 = vector.broadcast %13 : vector<1x24xf32> to vector<24x24xf32>
    %16 = arith.addf %14, %15 : vector<24x24xf32>
    %cst_7 = arith.constant 0.000000e+00 : f32
    %17 = vector.broadcast %cst_7 : f32 to vector<24x24xf32>
    %18 = arith.cmpf ogt, %16, %17 : vector<24x24xf32>
    %cst_8 = arith.constant 2.000000e-01 : f32
    %19 = vector.broadcast %cst_8 : f32 to vector<24x24xf32>
    %20 = arith.mulf %19, %16 : vector<24x24xf32>
    %21 = arith.select %18, %16, %20 : vector<24x24xi1>, vector<24x24xf32>
    %c0_9 = arith.constant 0 : index
    %c0_10 = arith.constant 0 : index
    %c0_11 = arith.constant 0 : index
    %22 = vector.load %arg0[%c0_9, %c0_10, %c0_11] : memref<3x24x24xf32, #tpu.memory_space<vmem>>, vector<3x24x24xf32>
    %cst_12 = arith.constant 0.000000e+00 : f32
    %23 = vector.broadcast %cst_12 : f32 to vector<3x24x24xf32>
    %24 = arith.cmpf ogt, %22, %23 : vector<3x24x24xf32>
    %25 = vector.shape_cast %21 : vector<24x24xf32> to vector<1x24x24xf32>
    %cst_13 = arith.constant -9.000000e+15 : f32
    %26 = vector.shape_cast %25 : vector<1x24x24xf32> to vector<1x24x24xf32>
    %27 = vector.broadcast %26 : vector<1x24x24xf32> to vector<3x24x24xf32>
    %28 = vector.broadcast %cst_13 : f32 to vector<3x24x24xf32>
    %29 = arith.select %24, %27, %28 : vector<3x24x24xi1>, vector<3x24x24xf32>
    %30 = vector.shape_cast %29 : vector<3x24x24xf32> to vector<72x24xf32>
    %cst_14 = arith.constant dense<0xFF800000> : vector<72xf32>
    %31 = vector.multi_reduction <maximumf>, %30, %cst_14 [1] : vector<72x24xf32> to vector<72xf32>
    %32 = vector.shape_cast %31 : vector<72xf32> to vector<72x1xf32>
    %33 = vector.broadcast %32 : vector<72x1xf32> to vector<72x24xf32>
    %34 = arith.subf %30, %33 : vector<72x24xf32>
    %35 = math.exp %34 : vector<72x24xf32>
    %cst_15 = arith.constant dense<0.000000e+00> : vector<72xf32>
    %36 = vector.multi_reduction <add>, %35, %cst_15 [1] : vector<72x24xf32> to vector<72xf32>
    %37 = vector.shape_cast %36 : vector<72xf32> to vector<72x1xf32>
    %38 = tpu.reciprocal %37 {approx = true} : vector<72x1xf32> -> vector<72x1xf32>
    %39 = vector.broadcast %38 : vector<72x1xf32> to vector<72x24xf32>
    %40 = arith.mulf %35, %39 : vector<72x24xf32>
    %cst_16 = arith.constant dense<0.000000e+00> : vector<72x32xf32>
    %41 = tpu.matmul %40, %8, %cst_16 {dimension_numbers = #tpu.dot_dimension_numbers<[1], [0], [0], [1], [0, 0, 1, 1], [], []>} : vector<72x24xf32>, vector<24x32xf32>, vector<72x32xf32> -> vector<72x32xf32>
    %cst_17 = arith.constant 0.000000e+00 : f32
    %42 = vector.broadcast %cst_17 : f32 to vector<72x32xf32>
    %43 = arith.cmpf ogt, %41, %42 : vector<72x32xf32>
    %44 = math.exp %41 : vector<72x32xf32>
    %cst_18 = arith.constant 1.000000e+00 : f32
    %45 = vector.broadcast %cst_18 : f32 to vector<72x32xf32>
    %46 = arith.subf %44, %45 : vector<72x32xf32>
    %47 = arith.select %43, %41, %46 : vector<72x32xi1>, vector<72x32xf32>
    %c0_19 = arith.constant 0 : index
    %c0_20 = arith.constant 0 : index
    %48 = vector.load %arg3[%c0_19, %c0_20] : memref<32x96xf32, #tpu.memory_space<vmem>>, vector<32x96xf32>
    %cst_21 = arith.constant dense<0.000000e+00> : vector<72x96xf32>
    %49 = tpu.matmul %47, %48, %cst_21 {dimension_numbers = #tpu.dot_dimension_numbers<[1], [0], [0], [1], [0, 0, 1, 1], [], []>} : vector<72x32xf32>, vector<32x96xf32>, vector<72x96xf32> -> vector<72x96xf32>
    %50 = vector.broadcast %4 : vector<1x96xf32> to vector<72x96xf32>
    %51 = arith.addf %49, %50 : vector<72x96xf32>
    %52 = vector.extract_strided_slice %51 {offsets = [0, 0], sizes = [72, 32], strides = [1, 1]} : vector<72x96xf32> to vector<72x32xf32>
    %53 = vector.shape_cast %52 : vector<72x32xf32> to vector<3x24x32xf32>
    %54 = vector.extract_strided_slice %51 {offsets = [0, 32], sizes = [72, 32], strides = [1, 1]} : vector<72x96xf32> to vector<72x32xf32>
    %55 = vector.shape_cast %54 : vector<72x32xf32> to vector<3x24x32xf32>
    %56 = vector.extract_strided_slice %51 {offsets = [0, 64], sizes = [72, 32], strides = [1, 1]} : vector<72x96xf32> to vector<72x32xf32>
    %57 = vector.shape_cast %56 : vector<72x32xf32> to vector<3x24x32xf32>
    "tpu.trace_start"() <{level = 10 : i32, message = "bqd,bkd->bqk"}> : () -> ()
    %cst_22 = arith.constant dense<0.000000e+00> : vector<3x24x24xf32>
    %58 = tpu.matmul %53, %55, %cst_22 {dimension_numbers = #tpu.dot_dimension_numbers<[2], [2], [1], [1], [0, 0, 0, 1, 1, 1], [0], [0]>} : vector<3x24x32xf32>, vector<3x24x32xf32>, vector<3x24x24xf32> -> vector<3x24x24xf32>
    "tpu.trace_stop"() : () -> ()
    %cst_23 = arith.constant 0.176776692 : f32
    %59 = vector.broadcast %cst_23 : f32 to vector<3x24x24xf32>
    %60 = arith.mulf %58, %59 : vector<3x24x24xf32>
    %cst_24 = arith.constant dense<0xFF800000> : vector<3x24xf32>
    %61 = vector.multi_reduction <maximumf>, %60, %cst_24 [2] : vector<3x24x24xf32> to vector<3x24xf32>
    %62 = vector.shape_cast %61 : vector<3x24xf32> to vector<3x24x1xf32>
    %63 = vector.broadcast %62 : vector<3x24x1xf32> to vector<3x24x24xf32>
    %64 = arith.subf %60, %63 : vector<3x24x24xf32>
    %65 = math.exp %64 : vector<3x24x24xf32>
    %cst_25 = arith.constant dense<0.000000e+00> : vector<3x24xf32>
    %66 = vector.multi_reduction <add>, %65, %cst_25 [2] : vector<3x24x24xf32> to vector<3x24xf32>
    %67 = vector.shape_cast %66 : vector<3x24xf32> to vector<3x24x1xf32>
    %68 = tpu.reciprocal %67 {approx = true} : vector<3x24x1xf32> -> vector<3x24x1xf32>
    %69 = vector.broadcast %68 : vector<3x24x1xf32> to vector<3x24x24xf32>
    %70 = arith.mulf %65, %69 : vector<3x24x24xf32>
    "tpu.trace_start"() <{level = 10 : i32, message = "bqk,bkd->bqd"}> : () -> ()
    %cst_26 = arith.constant dense<0.000000e+00> : vector<3x24x32xf32>
    %71 = tpu.matmul %70, %57, %cst_26 {dimension_numbers = #tpu.dot_dimension_numbers<[2], [1], [1], [2], [0, 0, 0, 1, 1, 2], [0], [0]>} : vector<3x24x24xf32>, vector<3x24x32xf32>, vector<3x24x32xf32> -> vector<3x24x32xf32>
    "tpu.trace_stop"() : () -> ()
    %72 = vector.shape_cast %71 : vector<3x24x32xf32> to vector<72x32xf32>
    %c0_27 = arith.constant 0 : index
    %c0_28 = arith.constant 0 : index
    %c0_29 = arith.constant 0 : index
    %73 = vector.load %arg4[%c0_27, %c0_28, %c0_29] : memref<2x32x32xf32, #tpu.memory_space<vmem>>, vector<1x32x32xf32>
    %74 = vector.shape_cast %73 : vector<1x32x32xf32> to vector<32x32xf32>
    %cst_30 = arith.constant dense<0.000000e+00> : vector<72x32xf32>
    %75 = tpu.matmul %72, %74, %cst_30 {dimension_numbers = #tpu.dot_dimension_numbers<[1], [0], [0], [1], [0, 0, 1, 1], [], []>} : vector<72x32xf32>, vector<32x32xf32>, vector<72x32xf32> -> vector<72x32xf32>
    %76 = vector.broadcast %5 : vector<1x32xf32> to vector<72x32xf32>
    %77 = arith.addf %75, %76 : vector<72x32xf32>
    %cst_31 = arith.constant 8.000000e-01 : f32
    %78 = vector.broadcast %cst_31 : f32 to vector<72x32xf32>
    %79 = arith.mulf %78, %77 : vector<72x32xf32>
    %cst_32 = arith.constant 2.000000e-01 : f32
    %80 = vector.broadcast %cst_32 : f32 to vector<72x32xf32>
    %81 = arith.mulf %80, %47 : vector<72x32xf32>
    %82 = arith.addf %79, %81 : vector<72x32xf32>
    %c1 = arith.constant 1 : index
    %c0_33 = arith.constant 0 : index
    %c0_34 = arith.constant 0 : index
    %83 = vector.load %arg4[%c1, %c0_33, %c0_34] : memref<2x32x32xf32, #tpu.memory_space<vmem>>, vector<1x32x32xf32>
    %84 = vector.shape_cast %83 : vector<1x32x32xf32> to vector<32x32xf32>
    %cst_35 = arith.constant dense<0.000000e+00> : vector<72x32xf32>
    %85 = tpu.matmul %82, %84, %cst_35 {dimension_numbers = #tpu.dot_dimension_numbers<[1], [0], [0], [1], [0, 0, 1, 1], [], []>} : vector<72x32xf32>, vector<32x32xf32>, vector<72x32xf32> -> vector<72x32xf32>
    %86 = vector.broadcast %6 : vector<1x32xf32> to vector<72x32xf32>
    %87 = arith.addf %85, %86 : vector<72x32xf32>
    %88 = arith.negf %87 : vector<72x32xf32>
    %89 = math.exp %88 : vector<72x32xf32>
    %cst_36 = arith.constant 1.000000e+00 : f32
    %90 = vector.broadcast %cst_36 : f32 to vector<72x32xf32>
    %91 = arith.addf %90, %89 : vector<72x32xf32>
    %92 = arith.divf %90, %91 : vector<72x32xf32>
    %93 = arith.mulf %92, %82 : vector<72x32xf32>
    %cst_37 = arith.constant 5.000000e-01 : f32
    %94 = vector.broadcast %cst_37 : f32 to vector<72x32xf32>
    %95 = arith.mulf %94, %93 : vector<72x32xf32>
    %cst_38 = arith.constant 5.000000e-01 : f32
    %96 = vector.broadcast %cst_38 : f32 to vector<72x32xf32>
    %97 = arith.mulf %96, %82 : vector<72x32xf32>
    %98 = arith.addf %95, %97 : vector<72x32xf32>
    %99 = vector.shape_cast %98 : vector<72x32xf32> to vector<3x24x32xf32>
    %c0_39 = arith.constant 0 : index
    %c0_40 = arith.constant 0 : index
    %c0_41 = arith.constant 0 : index
    %100 = vector.load %arg7[%c0_39, %c0_40, %c0_41] : memref<3x24x32xf32, #tpu.memory_space<vmem>>, vector<3x24x32xf32>
    tpu.vector_store %arg7[%c0_39, %c0_40, %c0_41], %99 {strides = array<i32>} : memref<3x24x32xf32, #tpu.memory_space<vmem>>, vector<3x24x32xf32>,
    %101 = vector.shape_cast %93 : vector<72x32xf32> to vector<3x24x32xf32>
    %102 = vector.extract_strided_slice %101 {offsets = [0, 16, 0], sizes = [1, 8, 32], strides = [1, 1, 1]} : vector<3x24x32xf32> to vector<1x8x32xf32>
    %103 = vector.shape_cast %102 : vector<1x8x32xf32> to vector<8x32xf32>
    %104 = vector.extract_strided_slice %101 {offsets = [1, 16, 0], sizes = [1, 8, 32], strides = [1, 1, 1]} : vector<3x24x32xf32> to vector<1x8x32xf32>
    %105 = vector.shape_cast %104 : vector<1x8x32xf32> to vector<8x32xf32>
    %106 = arith.addf %103, %105 : vector<8x32xf32>
    %107 = vector.extract_strided_slice %101 {offsets = [2, 16, 0], sizes = [1, 8, 32], strides = [1, 1, 1]} : vector<3x24x32xf32> to vector<1x8x32xf32>
    %108 = vector.shape_cast %107 : vector<1x8x32xf32> to vector<8x32xf32>
    %109 = arith.addf %106, %108 : vector<8x32xf32>
    %c0_42 = arith.constant 0 : index
    %c0_43 = arith.constant 0 : index
    %110 = vector.load %arg6[%c0_42, %c0_43] : memref<8x32xf32, #tpu.memory_space<vmem>>, vector<8x32xf32>
    tpu.vector_store %arg6[%c0_42, %c0_43], %109 {strides = array<i32>} : memref<8x32xf32, #tpu.memory_space<vmem>>, vector<8x32xf32>,
    return
  }
}

</mosaic_0001>

<llo_original>
// kernel: tpu_custom_call.1
$region0: #{tpu_custom_call.1}
  #allocation0 [shape = 'u32[]', space=smem, size = 0x4, offset = 0x4, fixed_abs, tag = 'smem constant byte address 0x4 - core index']
  #allocation1 [shape = 'u32[144,128]{1,0:T(1,128)}', space=vmem, size = 0x12000, scoped, tag = 'internal scratch']
  %s0 = inlined_call_operand.hbm [shape: f32[3,24,24], index: 0, kind: input, shape index: {}]
  %s1 = inlined_call_operand.vmem [shape: f32[24,16], index: 1, kind: input, shape index: {}]
  %s2 = inlined_call_operand.vmem [shape: f32[16,32], index: 2, kind: input, shape index: {}]
  %s3 = inlined_call_operand.vmem [shape: f32[32,96], index: 3, kind: input, shape index: {}]
  %s4 = inlined_call_operand.hbm [shape: f32[2,32,32], index: 4, kind: input, shape index: {}]
  %s5 = inlined_call_operand.vmem [shape: f32[8,96], index: 5, kind: input, shape index: {}]
  %s6 = inlined_call_operand.hbm [shape: f32[8,32], index: 6, kind: output, shape index: {0}]
  %s7 = inlined_call_operand.hbm [shape: f32[3,24,32], index: 7, kind: output, shape index: {1}]
  %8 = xla_tuple %s6, %s7
  %s9 = sld [smem:[#allocation0]]
  $region50: #{tpu_custom_call.1} parent=0
    _
  %s11 = ssub.s32 1, %s9
  %s12 = scalar_select 0, %s11, %s9
  $region1: #{tpu_custom_call.1} parent=0
    #allocation2 [shape = 'u8[36864]{0}', space=vmem, size = 0x9000, scoped, tag = 'input window, operand 0, single buffered']
    #allocation3 [shape = 's32[1]{0}', space=sflag, size = 0x4, scoped, tag = 'scoped memory for tpu_custom_call.1']
    #allocation4 [shape = 's32[1]{0}', space=sflag, size = 0x4, scoped, tag = 'scoped memory for tpu_custom_call.1']
    #allocation5 [shape = 'u8[32768]{0}', space=vmem, size = 0x8000, scoped, tag = 'input window, operand 4, single buffered']
    #allocation6 [shape = 's32[1]{0}', space=sflag, size = 0x4, scoped, tag = 'scoped memory for tpu_custom_call.1']
    #allocation7 [shape = 'u8[4096]{0}', space=vmem, size = 0x1000, scoped, tag = 'output window, operand 0, single buffered']
    #allocation8 [shape = 'u8[36864]{0}', space=vmem, size = 0x9000, scoped, tag = 'output window, operand 1, single buffered']
    #allocation9 [shape = 's32[1]{0}', space=sflag, size = 0x4, scoped, tag = 'scoped memory for tpu_custom_call.1']
    %13 = vsyncpa [#allocation3], 0
    %14 = vsyncpa [#allocation6], 0
    %15 = vsyncpa [#allocation4], 0
    %16 = vsyncpa [#allocation9], 0
    // Predicated region
    $region2: #{tpu_custom_call.1} parent=1 // pred_check
      _
    $region3: #{tpu_custom_call.1} parent=1 // pred_check_branch
      %18 = sbr.rel (0) target = $region5
    $region4: #{tpu_custom_call.1} parent=1 // pred_region
      %s20 = ssub.s32 1152, 1152
      %21 = vsyncadd [#allocation3], %s20
      %s22 = sshll.u32 [#allocation2], 4
      %s23 = int_to_ptr.vmem [resolvable:$true] %s22
      %28 = dma.hbm_to_vmem [thread:$0]  %s0, 1152, %s23, [#allocation3], 128, 128, 8
    $region5: #{tpu_custom_call.1} parent=1 // pred_fallthru
      _
    // Predicated region
    $region6: #{tpu_custom_call.1} parent=1 // pred_check
      _
    $region7: #{tpu_custom_call.1} parent=1 // pred_check_branch
      %30 = sbr.rel (0) target = $region9
    $region8: #{tpu_custom_call.1} parent=1 // pred_region
      _
    $region9: #{tpu_custom_call.1} parent=1 // pred_fallthru
      _
    // Predicated region
    $region10: #{tpu_custom_call.1} parent=1 // pred_check
      _
    $region11: #{tpu_custom_call.1} parent=1 // pred_check_branch
      %32 = sbr.rel (0) target = $region13
    $region12: #{tpu_custom_call.1} parent=1 // pred_region
      _
    $region13: #{tpu_custom_call.1} parent=1 // pred_fallthru
      _
    // Predicated region
    $region14: #{tpu_custom_call.1} parent=1 // pred_check
      _
    $region15: #{tpu_custom_call.1} parent=1 // pred_check_branch
      %34 = sbr.rel (0) target = $region17
    $region16: #{tpu_custom_call.1} parent=1 // pred_region
      _
    $region17: #{tpu_custom_call.1} parent=1 // pred_fallthru
      _
    // Predicated region
    $region18: #{tpu_custom_call.1} parent=1 // pred_check
      _
    $region19: #{tpu_custom_call.1} parent=1 // pred_check_branch
      %36 = sbr.rel (0) target = $region21
    $region20: #{tpu_custom_call.1} parent=1 // pred_region
      %s38 = ssub.s32 1024, 1024
      %39 = vsyncadd [#allocation6], %s38
      %s40 = sshll.u32 [#allocation5], 4
      %s41 = int_to_ptr.vmem [resolvable:$true] %s40
      %46 = dma.hbm_to_vmem [thread:$0]  %s4, 1024, %s41, [#allocation6], 128, 128, 8
    $region21: #{tpu_custom_call.1} parent=1 // pred_fallthru
      _
    // Predicated region
    $region22: #{tpu_custom_call.1} parent=1 // pred_check
      _
    $region23: #{tpu_custom_call.1} parent=1 // pred_check_branch
      %48 = sbr.rel (0) target = $region25
    $region24: #{tpu_custom_call.1} parent=1 // pred_region
      _
    $region25: #{tpu_custom_call.1} parent=1 // pred_fallthru
      _
    // Predicated region
    $region26: #{tpu_custom_call.1} parent=1 // pred_check
      _
    $region27: #{tpu_custom_call.1} parent=1 // pred_check_branch
      %50 = sbr.rel (0) target = $region29
    $region28: #{tpu_custom_call.1} parent=1 // pred_region
      %51 = dma.done [#allocation3], 1152
    $region29: #{tpu_custom_call.1} parent=1 // pred_fallthru
      _
    // Predicated region
    $region30: #{tpu_custom_call.1} parent=1 // pred_check
      _
    $region31: #{tpu_custom_call.1} parent=1 // pred_check_branch
      %53 = sbr.rel (0) target = $region33
    $region32: #{tpu_custom_call.1} parent=1 // pred_region
      %54 = dma.done [#allocation6], 1024
    $region33: #{tpu_custom_call.1} parent=1 // pred_fallthru
      _
    %v55 = vld [vmem:[%s1] sm:$0xff]
    %v56 = vld [vmem:[%s1 + $0x8] sm:$0xff]
    %v57 = vld [vmem:[%s1 + $0x10] sm:$0xff]
    %v58 = vld [vmem:[%s5] sm:$0xff]
    %v59 = vld [vmem:[%s2] sm:$0xff]
    %v60 = vld [vmem:[%s2 + $0x8] sm:$0xff]
    %vm61 = vcmask 130048
    %v63 = vsel %vm61, %v55, 0
    %v66 = vsel %vm61, %v56, 0
    %v69 = vsel %vm61, %v57, 0
    %71 = vmatprep.subr.mxu0 0.0
    %72 = vmatpush1.msra.mxu0 %v59
    %73 = vmatprep.subr.mxu0 0.0
    %74 = vmatpush1.msra.mxu0 %v60
    %75 = vmatprep.subr.mxu0 0.0
    %76 = vmatpush1.msra.mxu0 0.0
    %77 = vmatprep.subr.mxu0 0.0
    %78 = vmatpush1.msra.mxu0 0.0
    %79 = vmatprep.subr.mxu0 0.0
    %80 = vmatpush1.msra.mxu0 0.0
    %81 = vmatprep.subr.mxu0 0.0
    %82 = vmatpush1.msra.mxu0 0.0
    %83 = vmatprep.subr.mxu0 0.0
    %84 = vmatpush1.msra.mxu0 0.0
    %85 = vmatprep.subr.mxu0 0.0
    %86 = vmatpush1.msra.mxu0 0.0
    %87 = vmatprep.subr.mxu0 0.0
    %88 = vmatpush1.msra.mxu0 0.0
    %89 = vmatprep.subr.mxu0 0.0
    %90 = vmatpush1.msra.mxu0 0.0
    %91 = vmatprep.subr.mxu0 0.0
    %92 = vmatpush1.msra.mxu0 0.0
    %93 = vmatprep.subr.mxu0 0.0
    %94 = vmatpush1.msra.mxu0 0.0
    %95 = vmatprep.subr.mxu0 0.0
    %96 = vmatpush1.msra.mxu0 0.0
    %97 = vmatprep.subr.mxu0 0.0
    %98 = vmatpush1.msra.mxu0 0.0
    %99 = vmatprep.subr.mxu0 0.0
    %100 = vmatpush1.msra.mxu0 0.0
    %101 = vmatprep.subr.mxu0 0.0
    %102 = vmatpush1.msra.mxu0 0.0
    %103 = vmatprep.subr.mxu0 0.0
    %104 = vmatpush1.msra.mxu0 0.0
    %105 = vmatprep.subr.mxu0 0.0
    %106 = vmatpush1.msra.mxu0 0.0
    %107 = vmatprep.subr.mxu0 0.0
    %108 = vmatpush1.msra.mxu0 0.0
    %109 = vmatprep.subr.mxu0 0.0
    %110 = vmatpush1.msra.mxu0 0.0
    %111 = vmatprep.subr.mxu0 0.0
    %112 = vmatpush1.msra.mxu0 0.0
    %113 = vmatprep.subr.mxu0 0.0
    %114 = vmatpush1.msra.mxu0 0.0
    %115 = vmatprep.subr.mxu0 0.0
    %116 = vmatpush1.msra.mxu0 0.0
    %117 = vmatprep.subr.mxu0 0.0
    %118 = vmatpush1.msra.mxu0 0.0
    %119 = vmatprep.subr.mxu0 0.0
    %120 = vmatpush1.msra.mxu0 0.0
    %121 = vmatprep.subr.mxu0 0.0
    %122 = vmatpush1.msra.mxu0 0.0
    %123 = vmatprep.subr.mxu0 0.0
    %124 = vmatpush1.msra.mxu0 0.0
    %125 = vmatprep.subr.mxu0 0.0
    %126 = vmatpush1.msra.mxu0 0.0
    %127 = vmatprep.subr.mxu0 0.0
    %128 = vmatpush1.msra.mxu0 0.0
    %129 = vmatprep.subr.mxu0 0.0
    %130 = vmatpush1.msra.mxu0 0.0
    %131 = vmatprep.subr.mxu0 0.0
    %132 = vmatpush1.msra.mxu0 0.0
    %133 = vmatprep.subr.mxu0 0.0
    %134 = vmatpush1.msra.mxu0 0.0
    %135 = vmatprep.mubr.f32.mxu0 0.0
    %136 = vmatmul.mubr.f32.gmra.mrb[0].mxu0 %v63
    %v137 = vpop.f32.mrb[0].mxu0
    %v138 = vadd.f32 0.0, %v137
    %v139 = vpop.f32.mrb[0].mxu0
    %140 = vmatprep.mubr.f32.mxu0 0.0
    %141 = vmatmul.mubr.f32.gmra.mrb[0].mxu0 %v66
    %v142 = vpop.f32.mrb[0].mxu0
    %v143 = vadd.f32 0.0, %v142
    %v144 = vpop.f32.mrb[0].mxu0
    %145 = vmatprep.mubr.f32.mxu0 0.0
    %146 = vmatmul.mubr.f32.gmra.mrb[0].mxu0 %v69
    %v147 = vpop.f32.mrb[0].mxu0
    %v148 = vadd.f32 0.0, %v147
    %v149 = vpop.f32.mrb[0].mxu0
    %150 = vdwg.mxu0
    %v151 = vlaneseq
    %v152 = vshrl.u32 %v151, 7
    %v153 = vsub.s32 0, %v152
    %v154 = vrot.slane %v58, %v153
    %v155 = vmul.f32 %v138, %v154
    %v156 = vmul.f32 %v143, %v154
    %v157 = vmul.f32 %v148, %v154
    %vm158 = vcmask 261120
    %v159 = vsel %vm158, %v155, 0.0
    %160 = vadd.xlane.f32.xlu0 %v159
    %v161 = vpop.xlane.xlu0 %160
    %v162 = vsel %vm158, %v156, 0.0
    %163 = vadd.xlane.f32.xlu0 %v162
    %v164 = vpop.xlane.xlu0 %163
    %v165 = vsel %vm158, %v157, 0.0
    %166 = vadd.xlane.f32.xlu0 %v165
    %v167 = vpop.xlane.xlu0 %166
    %169 = vrot.lane.b32.xlu0 %v58, 96
    %v170 = vpop.permute.xlu0 %169
    %v171 = vsel %vm158, %v170, 0
    %v174 = vsel %vm158, %v138, 0
    %v177 = vsel %vm158, %v143, 0
    %v180 = vsel %vm158, %v148, 0
    %182 = vmatprep.subr.mxu0 0.0
    %183 = vmatpush1.xpose.msra.mxu0 %v174
    %184 = vmatprep.subr.mxu0 0.0
    %185 = vmatpush1.xpose.msra.mxu0 %v177
    %186 = vmatprep.subr.mxu0 0.0
    %187 = vmatpush1.xpose.msra.mxu0 %v180
    %188 = vmatprep.subr.mxu0 0.0
    %189 = vmatpush1.xpose.msra.mxu0 0.0
    %190 = vmatprep.subr.mxu0 0.0
    %191 = vmatpush1.xpose.msra.mxu0 0.0
    %192 = vmatprep.subr.mxu0 0.0
    %193 = vmatpush1.xpose.msra.mxu0 0.0
    %194 = vmatprep.subr.mxu0 0.0
    %195 = vmatpush1.xpose.msra.mxu0 0.0
    %196 = vmatprep.subr.mxu0 0.0
    %197 = vmatpush1.xpose.msra.mxu0 0.0
    %198 = vmatprep.subr.mxu0 0.0
    %199 = vmatpush1.xpose.msra.mxu0 0.0
    %200 = vmatprep.subr.mxu0 0.0
    %201 = vmatpush1.xpose.msra.mxu0 0.0
    %202 = vmatprep.subr.mxu0 0.0
    %203 = vmatpush1.xpose.msra.mxu0 0.0
    %204 = vmatprep.subr.mxu0 0.0
    %205 = vmatpush1.xpose.msra.mxu0 0.0
    %206 = vmatprep.subr.mxu0 0.0
    %207 = vmatpush1.xpose.msra.mxu0 0.0
    %208 = vmatprep.subr.mxu0 0.0
    %209 = vmatpush1.xpose.msra.mxu0 0.0
    %210 = vmatprep.subr.mxu0 0.0
    %211 = vmatpush1.xpose.msra.mxu0 0.0
    %212 = vmatprep.subr.mxu0 0.0
    %213 = vmatpush1.xpose.msra.mxu0 0.0
    %214 = vmatprep.subr.mxu0 0.0
    %215 = vmatpush1.xpose.msra.mxu0 0.0
    %216 = vmatprep.subr.mxu0 0.0
    %217 = vmatpush1.xpose.msra.mxu0 0.0
    %218 = vmatprep.subr.mxu0 0.0
    %219 = vmatpush1.xpose.msra.mxu0 0.0
    %220 = vmatprep.subr.mxu0 0.0
    %221 = vmatpush1.xpose.msra.mxu0 0.0
    %222 = vmatprep.subr.mxu0 0.0
    %223 = vmatpush1.xpose.msra.mxu0 0.0
    %224 = vmatprep.subr.mxu0 0.0
    %225 = vmatpush1.xpose.msra.mxu0 0.0
    %226 = vmatprep.subr.mxu0 0.0
    %227 = vmatpush1.xpose.msra.mxu0 0.0
    %228 = vmatprep.subr.mxu0 0.0
    %229 = vmatpush1.xpose.msra.mxu0 0.0
    %230 = vmatprep.subr.mxu0 0.0
    %231 = vmatpush1.xpose.msra.mxu0 0.0
    %232 = vmatprep.subr.mxu0 0.0
    %233 = vmatpush1.xpose.msra.mxu0 0.0
    %234 = vmatprep.subr.mxu0 0.0
    %235 = vmatpush1.xpose.msra.mxu0 0.0
    %236 = vmatprep.subr.mxu0 0.0
    %237 = vmatpush1.xpose.msra.mxu0 0.0
    %238 = vmatprep.subr.mxu0 0.0
    %239 = vmatpush1.xpose.msra.mxu0 0.0
    %240 = vmatprep.subr.mxu0 0.0
    %241 = vmatpush1.xpose.msra.mxu0 0.0
    %242 = vmatprep.subr.mxu0 0.0
    %243 = vmatpush1.xpose.msra.mxu0 0.0
    %244 = vmatprep.subr.mxu0 0.0
    %245 = vmatpush1.xpose.msra.mxu0 0.0
    %246 = vmatprep.mubr.f32.mxu0 0.0
    %247 = vmatmul.mubr.f32.gmra.mrb[0].mxu0 %v171
    %v248 = vpop.f32.mrb[0].mxu0
    %v249 = vadd.f32 0.0, %v248
    %v250 = vpop.f32.mrb[0].mxu0
    %251 = vdwg.mxu0
    %v252 = vlaneseq
    %v253 = vshrl.u32 %v252, 7
    %v254 = vsub.s32 0, %v253
    %v255 = vrot.slane %v249, %v254
    %v256 = vadd.f32 %v161, %v255
    %v257 = vadd.f32 %v164, %v255
    %v258 = vadd.f32 %v167, %v255
    %vm259 = vcmp.gt.f32.partialorder %v256, 0.0
    %vm260 = vcmp.gt.f32.partialorder %v257, 0.0
    %vm261 = vcmp.gt.f32.partialorder %v258, 0.0
    %v262 = vmul.f32 %v256, 0.2
    %v263 = vmul.f32 %v257, 0.2
    %v264 = vmul.f32 %v258, 0.2
    %v265 = vsel %vm259, %v256, %v262
    %v266 = vsel %vm260, %v257, %v263
    %v267 = vsel %vm261, %v258, %v264
    %v268 = vld [vmem:[#allocation2] sm:$0xff]
    %v269 = vld [vmem:[#allocation2 + $0x8] sm:$0xff]
    %v270 = vld [vmem:[#allocation2 + $0x10] sm:$0xff]
    %v271 = vld [vmem:[#allocation2 + $0x18] sm:$0xff]
    %v272 = vld [vmem:[#allocation2 + $0x20] sm:$0xff]
    %v273 = vld [vmem:[#allocation2 + $0x28] sm:$0xff]
    %v274 = vld [vmem:[#allocation2 + $0x30] sm:$0xff]
    %v275 = vld [vmem:[#allocation2 + $0x38] sm:$0xff]
    %v276 = vld [vmem:[#allocation2 + $0x40] sm:$0xff]
    %vm277 = vcmp.gt.f32.partialorder %v268, 0.0
    %vm278 = vcmp.gt.f32.partialorder %v269, 0.0
    %vm279 = vcmp.gt.f32.partialorder %v270, 0.0
    %vm280 = vcmp.gt.f32.partialorder %v271, 0.0
    %vm281 = vcmp.gt.f32.partialorder %v272, 0.0
    %vm282 = vcmp.gt.f32.partialorder %v273, 0.0
    %vm283 = vcmp.gt.f32.partialorder %v274, 0.0
    %vm284 = vcmp.gt.f32.partialorder %v275, 0.0
    %vm285 = vcmp.gt.f32.partialorder %v276, 0.0
    %v286 = vsel %vm277, %v265, -9e+15
    %v287 = vsel %vm278, %v266, -9e+15
    %v288 = vsel %vm279, %v267, -9e+15
    %v289 = vsel %vm280, %v265, -9e+15
    %v290 = vsel %vm281, %v266, -9e+15
    %v291 = vsel %vm282, %v267, -9e+15
    %v292 = vsel %vm283, %v265, -9e+15
    %v293 = vsel %vm284, %v266, -9e+15
    %v294 = vsel %vm285, %v267, -9e+15
    %vm295 = vcmask 195584
    %v296 = vsel %vm295, %v286, -inf
    %297 = vmax.xlane.f32.xlu0 %v296
    %v298 = vpop.xlane.xlu0 %297
    %v299 = vsel %vm295, %v287, -inf
    %300 = vmax.xlane.f32.xlu0 %v299
    %v301 = vpop.xlane.xlu0 %300
    %v302 = vsel %vm295, %v288, -inf
    %303 = vmax.xlane.f32.xlu0 %v302
    %v304 = vpop.xlane.xlu0 %303
    %v305 = vsel %vm295, %v289, -inf
    %306 = vmax.xlane.f32.xlu0 %v305
    %v307 = vpop.xlane.xlu0 %306
    %v308 = vsel %vm295, %v290, -inf
    %309 = vmax.xlane.f32.xlu0 %v308
    %v310 = vpop.xlane.xlu0 %309
    %v311 = vsel %vm295, %v291, -inf
    %312 = vmax.xlane.f32.xlu0 %v311
    %v313 = vpop.xlane.xlu0 %312
    %v314 = vsel %vm295, %v292, -inf
    %315 = vmax.xlane.f32.xlu0 %v314
    %v316 = vpop.xlane.xlu0 %315
    %v317 = vsel %vm295, %v293, -inf
    %318 = vmax.xlane.f32.xlu0 %v317
    %v319 = vpop.xlane.xlu0 %318
    %v320 = vsel %vm295, %v294, -inf
    %321 = vmax.xlane.f32.xlu0 %v320
    %v322 = vpop.xlane.xlu0 %321
    %v323 = vsub.f32 %v286, %v298
    %v324 = vsub.f32 %v287, %v301
    %v325 = vsub.f32 %v288, %v304
    %v326 = vsub.f32 %v289, %v307
    %v327 = vsub.f32 %v290, %v310
    %v328 = vsub.f32 %v291, %v313
    %v329 = vsub.f32 %v292, %v316
    %v330 = vsub.f32 %v293, %v319
    %v331 = vsub.f32 %v294, %v322
    %v332 = vmul.f32 %v323, 1.442695
    %v333 = vpow.pop %v332
    %v334 = vmul.f32 %v324, 1.442695
    %v335 = vpow.pop %v334
    %v336 = vmul.f32 %v325, 1.442695
    %v337 = vpow.pop %v336
    %v338 = vmul.f32 %v326, 1.442695
    %v339 = vpow.pop %v338
    %v340 = vmul.f32 %v327, 1.442695
    %v341 = vpow.pop %v340
    %v342 = vmul.f32 %v328, 1.442695
    %v343 = vpow.pop %v342
    %v344 = vmul.f32 %v329, 1.442695
    %v345 = vpow.pop %v344
    %v346 = vmul.f32 %v330, 1.442695
    %v347 = vpow.pop %v346
    %v348 = vmul.f32 %v331, 1.442695
    %v349 = vpow.pop %v348
    %v350 = vsel %vm295, %v333, 0.0
    %351 = vadd.xlane.f32.xlu0 %v350
    %v352 = vpop.xlane.xlu0 %351
    %v353 = vsel %vm295, %v335, 0.0
    %354 = vadd.xlane.f32.xlu0 %v353
    %v355 = vpop.xlane.xlu0 %354
    %v356 = vsel %vm295, %v337, 0.0
    %357 = vadd.xlane.f32.xlu0 %v356
    %v358 = vpop.xlane.xlu0 %357
    %v359 = vsel %vm295, %v339, 0.0
    %360 = vadd.xlane.f32.xlu0 %v359
    %v361 = vpop.xlane.xlu0 %360
    %v362 = vsel %vm295, %v341, 0.0
    %363 = vadd.xlane.f32.xlu0 %v362
    %v364 = vpop.xlane.xlu0 %363
    %v365 = vsel %vm295, %v343, 0.0
    %366 = vadd.xlane.f32.xlu0 %v365
    %v367 = vpop.xlane.xlu0 %366
    %v368 = vsel %vm295, %v345, 0.0
    %369 = vadd.xlane.f32.xlu0 %v368
    %v370 = vpop.xlane.xlu0 %369
    %v371 = vsel %vm295, %v347, 0.0
    %372 = vadd.xlane.f32.xlu0 %v371
    %v373 = vpop.xlane.xlu0 %372
    %v374 = vsel %vm295, %v349, 0.0
    %375 = vadd.xlane.f32.xlu0 %v374
    %v376 = vpop.xlane.xlu0 %375
    %v377 = vrcp.pop %v352
    %v378 = vrcp.pop %v355
    %v379 = vrcp.pop %v358
    %v380 = vrcp.pop %v361
    %v381 = vrcp.pop %v364
    %v382 = vrcp.pop %v367
    %v383 = vrcp.pop %v370
    %v384 = vrcp.pop %v373
    %v385 = vrcp.pop %v376
    %v386 = vmul.f32 %v333, %v377
    %v387 = vmul.f32 %v335, %v378
    %v388 = vmul.f32 %v337, %v379
    %v389 = vmul.f32 %v339, %v380
    %v390 = vmul.f32 %v341, %v381
    %v391 = vmul.f32 %v343, %v382
    %v392 = vmul.f32 %v345, %v383
    %v393 = vmul.f32 %v347, %v384
    %v394 = vmul.f32 %v349, %v385
    %v396 = vsel %vm295, %v386, 0
    %v399 = vsel %vm295, %v387, 0
    %v402 = vsel %vm295, %v388, 0
    %v405 = vsel %vm295, %v389, 0
    %v408 = vsel %vm295, %v390, 0
    %v411 = vsel %vm295, %v391, 0
    %v414 = vsel %vm295, %v392, 0
    %v417 = vsel %vm295, %v393, 0
    %v420 = vsel %vm295, %v394, 0
    %422 = vmatprep.subr.mxu0 0.0
    %423 = vmatpush1.msra.mxu0 %v138
    %424 = vmatprep.subr.mxu0 0.0
    %425 = vmatpush1.msra.mxu0 %v143
    %426 = vmatprep.subr.mxu0 0.0
    %427 = vmatpush1.msra.mxu0 %v148
    %428 = vmatprep.subr.mxu0 0.0
    %429 = vmatpush1.msra.mxu0 0.0
    %430 = vmatprep.subr.mxu0 0.0
    %431 = vmatpush1.msra.mxu0 0.0
    %432 = vmatprep.subr.mxu0 0.0
    %433 = vmatpush1.msra.mxu0 0.0
    %434 = vmatprep.subr.mxu0 0.0
    %435 = vmatpush1.msra.mxu0 0.0
    %436 = vmatprep.subr.mxu0 0.0
    %437 = vmatpush1.msra.mxu0 0.0
    %438 = vmatprep.subr.mxu0 0.0
    %439 = vmatpush1.msra.mxu0 0.0
    %440 = vmatprep.subr.mxu0 0.0
    %441 = vmatpush1.msra.mxu0 0.0
    %442 = vmatprep.subr.mxu0 0.0
    %443 = vmatpush1.msra.mxu0 0.0
    %444 = vmatprep.subr.mxu0 0.0
    %445 = vmatpush1.msra.mxu0 0.0
    %446 = vmatprep.subr.mxu0 0.0
    %447 = vmatpush1.msra.mxu0 0.0
    %448 = vmatprep.subr.mxu0 0.0
    %449 = vmatpush1.msra.mxu0 0.0
    %450 = vmatprep.subr.mxu0 0.0
    %451 = vmatpush1.msra.mxu0 0.0
    %452 = vmatprep.subr.mxu0 0.0
    %453 = vmatpush1.msra.mxu0 0.0
    %454 = vmatprep.subr.mxu0 0.0
    %455 = vmatpush1.msra.mxu0 0.0
    %456 = vmatprep.subr.mxu0 0.0
    %457 = vmatpush1.msra.mxu0 0.0
    %458 = vmatprep.subr.mxu0 0.0
    %459 = vmatpush1.msra.mxu0 0.0
    %460 = vmatprep.subr.mxu0 0.0
    %461 = vmatpush1.msra.mxu0 0.0
    %462 = vmatprep.subr.mxu0 0.0
    %463 = vmatpush1.msra.mxu0 0.0
    %464 = vmatprep.subr.mxu0 0.0
    %465 = vmatpush1.msra.mxu0 0.0
    %466 = vmatprep.subr.mxu0 0.0
    %467 = vmatpush1.msra.mxu0 0.0
    %468 = vmatprep.subr.mxu0 0.0
    %469 = vmatpush1.msra.mxu0 0.0
    %470 = vmatprep.subr.mxu0 0.0
    %471 = vmatpush1.msra.mxu0 0.0
    %472 = vmatprep.subr.mxu0 0.0
    %473 = vmatpush1.msra.mxu0 0.0
    %474 = vmatprep.subr.mxu0 0.0
    %475 = vmatpush1.msra.mxu0 0.0
    %476 = vmatprep.subr.mxu0 0.0
    %477 = vmatpush1.msra.mxu0 0.0
    %478 = vmatprep.subr.mxu0 0.0
    %479 = vmatpush1.msra.mxu0 0.0
    %480 = vmatprep.subr.mxu0 0.0
    %481 = vmatpush1.msra.mxu0 0.0
    %482 = vmatprep.subr.mxu0 0.0
    %483 = vmatpush1.msra.mxu0 0.0
    %484 = vmatprep.subr.mxu0 0.0
    %485 = vmatpush1.msra.mxu0 0.0
    %486 = vmatprep.mubr.f32.mxu0 0.0
    %487 = vmatmul.mubr.f32.gmra.mrb[0].mxu0 %v396
    %v488 = vpop.f32.mrb[0].mxu0
    %v489 = vadd.f32 0.0, %v488
    %v490 = vpop.f32.mrb[0].mxu0
    %491 = vmatprep.mubr.f32.mxu0 0.0
    %492 = vmatmul.mubr.f32.gmra.mrb[0].mxu0 %v399
    %v493 = vpop.f32.mrb[0].mxu0
    %v494 = vadd.f32 0.0, %v493
    %v495 = vpop.f32.mrb[0].mxu0
    %496 = vmatprep.mubr.f32.mxu0 0.0
    %497 = vmatmul.mubr.f32.gmra.mrb[0].mxu0 %v402
    %v498 = vpop.f32.mrb[0].mxu0
    %v499 = vadd.f32 0.0, %v498
    %v500 = vpop.f32.mrb[0].mxu0
    %501 = vmatprep.mubr.f32.mxu0 0.0
    %502 = vmatmul.mubr.f32.gmra.mrb[0].mxu0 %v405
    %v503 = vpop.f32.mrb[0].mxu0
    %v504 = vadd.f32 0.0, %v503
    %v505 = vpop.f32.mrb[0].mxu0
    %506 = vmatprep.mubr.f32.mxu0 0.0
    %507 = vmatmul.mubr.f32.gmra.mrb[0].mxu0 %v408
    %v508 = vpop.f32.mrb[0].mxu0
    %v509 = vadd.f32 0.0, %v508
    %v510 = vpop.f32.mrb[0].mxu0
    %511 = vmatprep.mubr.f32.mxu0 0.0
    %512 = vmatmul.mubr.f32.gmra.mrb[0].mxu0 %v411
    %v513 = vpop.f32.mrb[0].mxu0
    %v514 = vadd.f32 0.0, %v513
    %v515 = vpop.f32.mrb[0].mxu0
    %516 = vmatprep.mubr.f32.mxu0 0.0
    %517 = vmatmul.mubr.f32.gmra.mrb[0].mxu0 %v414
    %v518 = vpop.f32.mrb[0].mxu0
    %v519 = vadd.f32 0.0, %v518
    %v520 = vpop.f32.mrb[0].mxu0
    %521 = vmatprep.mubr.f32.mxu0 0.0
    %522 = vmatmul.mubr.f32.gmra.mrb[0].mxu0 %v417
    %v523 = vpop.f32.mrb[0].mxu0
    %v524 = vadd.f32 0.0, %v523
    %v525 = vpop.f32.mrb[0].mxu0
    %526 = vmatprep.mubr.f32.mxu0 0.0
    %527 = vmatmul.mubr.f32.gmra.mrb[0].mxu0 %v420
    %v528 = vpop.f32.mrb[0].mxu0
    %v529 = vadd.f32 0.0, %v528
    %v530 = vpop.f32.mrb[0].mxu0
    %531 = vdwg.mxu0
    %vm532 = vcmp.gt.f32.partialorder %v489, 0.0
    %vm533 = vcmp.gt.f32.partialorder %v494, 0.0
    %vm534 = vcmp.gt.f32.partialorder %v499, 0.0
    %vm535 = vcmp.gt.f32.partialorder %v504, 0.0
    %vm536 = vcmp.gt.f32.partialorder %v509, 0.0
    %vm537 = vcmp.gt.f32.partialorder %v514, 0.0
    %vm538 = vcmp.gt.f32.partialorder %v519, 0.0
    %vm539 = vcmp.gt.f32.partialorder %v524, 0.0
    %vm540 = vcmp.gt.f32.partialorder %v529, 0.0
    %v541 = vmul.f32 %v489, 1.442695
    %v542 = vpow.pop %v541
    %v543 = vmul.f32 %v494, 1.442695
    %v544 = vpow.pop %v543
    %v545 = vmul.f32 %v499, 1.442695
    %v546 = vpow.pop %v545
    %v547 = vmul.f32 %v504, 1.442695
    %v548 = vpow.pop %v547
    %v549 = vmul.f32 %v509, 1.442695
    %v550 = vpow.pop %v549
    %v551 = vmul.f32 %v514, 1.442695
    %v552 = vpow.pop %v551
    %v553 = vmul.f32 %v519, 1.442695
    %v554 = vpow.pop %v553
    %v555 = vmul.f32 %v524, 1.442695
    %v556 = vpow.pop %v555
    %v557 = vmul.f32 %v529, 1.442695
    %v558 = vpow.pop %v557
    %v559 = vsub.f32 %v542, 1.0
    %v560 = vsub.f32 %v544, 1.0
    %v561 = vsub.f32 %v546, 1.0
    %v562 = vsub.f32 %v548, 1.0
    %v563 = vsub.f32 %v550, 1.0
    %v564 = vsub.f32 %v552, 1.0
    %v565 = vsub.f32 %v554, 1.0
    %v566 = vsub.f32 %v556, 1.0
    %v567 = vsub.f32 %v558, 1.0
    %v568 = vsel %vm532, %v489, %v559
    %v569 = vsel %vm533, %v494, %v560
    %v570 = vsel %vm534, %v499, %v561
    %v571 = vsel %vm535, %v504, %v562
    %v572 = vsel %vm536, %v509, %v563
    %v573 = vsel %vm537, %v514, %v564
    %v574 = vsel %vm538, %v519, %v565
    %v575 = vsel %vm539, %v524, %v566
    %v576 = vsel %vm540, %v529, %v567
    %v577 = vld [vmem:[%s3] sm:$0xff]
    %v578 = vld [vmem:[%s3 + $0x8] sm:$0xff]
    %v579 = vld [vmem:[%s3 + $0x10] sm:$0xff]
    %v580 = vld [vmem:[%s3 + $0x18] sm:$0xff]
    %v581 = vlaneseq
    %v582 = vshrl.u32 %v581, 7
    %v583 = vsub.s32 1, %v582
    %v584 = vrot.slane %v58, %v583
    %v586 = vsel %vm158, %v568, 0
    %v589 = vsel %vm158, %v569, 0
    %v592 = vsel %vm158, %v570, 0
    %v595 = vsel %vm158, %v571, 0
    %v598 = vsel %vm158, %v572, 0
    %v601 = vsel %vm158, %v573, 0
    %v604 = vsel %vm158, %v574, 0
    %v607 = vsel %vm158, %v575, 0
    %v610 = vsel %vm158, %v576, 0
    %612 = vmatprep.subr.mxu0 0.0
    %613 = vmatpush1.msra.mxu0 %v577
    %614 = vmatprep.subr.mxu0 0.0
    %615 = vmatpush1.msra.mxu0 %v578
    %616 = vmatprep.subr.mxu0 0.0
    %617 = vmatpush1.msra.mxu0 %v579
    %618 = vmatprep.subr.mxu0 0.0
    %619 = vmatpush1.msra.mxu0 %v580
    %620 = vmatprep.subr.mxu0 0.0
    %621 = vmatpush1.msra.mxu0 0.0
    %622 = vmatprep.subr.mxu0 0.0
    %623 = vmatpush1.msra.mxu0 0.0
    %624 = vmatprep.subr.mxu0 0.0
    %625 = vmatpush1.msra.mxu0 0.0
    %626 = vmatprep.subr.mxu0 0.0
    %627 = vmatpush1.msra.mxu0 0.0
    %628 = vmatprep.subr.mxu0 0.0
    %629 = vmatpush1.msra.mxu0 0.0
    %630 = vmatprep.subr.mxu0 0.0
    %631 = vmatpush1.msra.mxu0 0.0
    %632 = vmatprep.subr.mxu0 0.0
    %633 = vmatpush1.msra.mxu0 0.0
    %634 = vmatprep.subr.mxu0 0.0
    %635 = vmatpush1.msra.mxu0 0.0
    %636 = vmatprep.subr.mxu0 0.0
    %637 = vmatpush1.msra.mxu0 0.0
    %638 = vmatprep.subr.mxu0 0.0
    %639 = vmatpush1.msra.mxu0 0.0
    %640 = vmatprep.subr.mxu0 0.0
    %641 = vmatpush1.msra.mxu0 0.0
    %642 = vmatprep.subr.mxu0 0.0
    %643 = vmatpush1.msra.mxu0 0.0
    %644 = vmatprep.subr.mxu0 0.0
    %645 = vmatpush1.msra.mxu0 0.0
    %646 = vmatprep.subr.mxu0 0.0
    %647 = vmatpush1.msra.mxu0 0.0
    %648 = vmatprep.subr.mxu0 0.0
    %649 = vmatpush1.msra.mxu0 0.0
    %650 = vmatprep.subr.mxu0 0.0
    %651 = vmatpush1.msra.mxu0 0.0
    %652 = vmatprep.subr.mxu0 0.0
    %653 = vmatpush1.msra.mxu0 0.0
    %654 = vmatprep.subr.mxu0 0.0
    %655 = vmatpush1.msra.mxu0 0.0
    %656 = vmatprep.subr.mxu0 0.0
    %657 = vmatpush1.msra.mxu0 0.0
    %658 = vmatprep.subr.mxu0 0.0
    %659 = vmatpush1.msra.mxu0 0.0
    %660 = vmatprep.subr.mxu0 0.0
    %661 = vmatpush1.msra.mxu0 0.0
    %662 = vmatprep.subr.mxu0 0.0
    %663 = vmatpush1.msra.mxu0 0.0
    %664 = vmatprep.subr.mxu0 0.0
    %665 = vmatpush1.msra.mxu0 0.0
    %666 = vmatprep.subr.mxu0 0.0
    %667 = vmatpush1.msra.mxu0 0.0
    %668 = vmatprep.subr.mxu0 0.0
    %669 = vmatpush1.msra.mxu0 0.0
    %670 = vmatprep.subr.mxu0 0.0
    %671 = vmatpush1.msra.mxu0 0.0
    %672 = vmatprep.subr.mxu0 0.0
    %673 = vmatpush1.msra.mxu0 0.0
    %674 = vmatprep.subr.mxu0 0.0
    %675 = vmatpush1.msra.mxu0 0.0
    %676 = vmatprep.mubr.f32.mxu0 0.0
    %677 = vmatmul.mubr.f32.gmra.mrb[0].mxu0 %v586
    %v678 = vpop.f32.mrb[0].mxu0
    %v679 = vadd.f32 %v584, %v678
    %v680 = vpop.f32.mrb[0].mxu0
    %681 = vmatprep.mubr.f32.mxu0 0.0
    %682 = vmatmul.mubr.f32.gmra.mrb[0].mxu0 %v589
    %v683 = vpop.f32.mrb[0].mxu0
    %v684 = vadd.f32 %v584, %v683
    %v685 = vpop.f32.mrb[0].mxu0
    %686 = vmatprep.mubr.f32.mxu0 0.0
    %687 = vmatmul.mubr.f32.gmra.mrb[0].mxu0 %v592
    %v688 = vpop.f32.mrb[0].mxu0
    %v689 = vadd.f32 %v584, %v688
    %v690 = vpop.f32.mrb[0].mxu0
    %691 = vmatprep.mubr.f32.mxu0 0.0
    %692 = vmatmul.mubr.f32.gmra.mrb[0].mxu0 %v595
    %v693 = vpop.f32.mrb[0].mxu0
    %v694 = vadd.f32 %v584, %v693
    %v695 = vpop.f32.mrb[0].mxu0
    %696 = vmatprep.mubr.f32.mxu0 0.0
    %697 = vmatmul.mubr.f32.gmra.mrb[0].mxu0 %v598
    %v698 = vpop.f32.mrb[0].mxu0
    %v699 = vadd.f32 %v584, %v698
    %v700 = vpop.f32.mrb[0].mxu0
    %701 = vmatprep.mubr.f32.mxu0 0.0
    %702 = vmatmul.mubr.f32.gmra.mrb[0].mxu0 %v601
    %v703 = vpop.f32.mrb[0].mxu0
    %v704 = vadd.f32 %v584, %v703
    %v705 = vpop.f32.mrb[0].mxu0
    %706 = vmatprep.mubr.f32.mxu0 0.0
    %707 = vmatmul.mubr.f32.gmra.mrb[0].mxu0 %v604
    %v708 = vpop.f32.mrb[0].mxu0
    %v709 = vadd.f32 %v584, %v708
    %v710 = vpop.f32.mrb[0].mxu0
    %711 = vmatprep.mubr.f32.mxu0 0.0
    %712 = vmatmul.mubr.f32.gmra.mrb[0].mxu0 %v607
    %v713 = vpop.f32.mrb[0].mxu0
    %v714 = vadd.f32 %v584, %v713
    %v715 = vpop.f32.mrb[0].mxu0
    %716 = vmatprep.mubr.f32.mxu0 0.0
    %717 = vmatmul.mubr.f32.gmra.mrb[0].mxu0 %v610
    %v718 = vpop.f32.mrb[0].mxu0
    %v719 = vadd.f32 %v584, %v718
    %v720 = vpop.f32.mrb[0].mxu0
    %721 = vdwg.mxu0
    %725 = vrot.lane.b32.xlu0 %v679, 96
    %v726 = vpop.permute.xlu0 %725
    %727 = vrot.lane.b32.xlu0 %v684, 96
    %v728 = vpop.permute.xlu0 %727
    %729 = vrot.lane.b32.xlu0 %v689, 96
    %v730 = vpop.permute.xlu0 %729
    %v731 = vsel %vm158, %v679, 0
    %v733 = vsel %vm158, %v684, 0
    %v735 = vsel %vm158, %v689, 0
    %v737 = vsel %vm158, %v726, 0
    %v739 = vsel %vm158, %v728, 0
    %v741 = vsel %vm158, %v730, 0
    %743 = vmatprep.subr.mxu0 0.0
    %744 = vmatpush1.xpose.msra.mxu0 %v737
    %745 = vmatprep.subr.mxu0 0.0
    %746 = vmatpush1.xpose.msra.mxu0 %v739
    %747 = vmatprep.subr.mxu0 0.0
    %748 = vmatpush1.xpose.msra.mxu0 %v741
    %749 = vmatprep.subr.mxu0 0.0
    %750 = vmatpush1.xpose.msra.mxu0 0.0
    %751 = vmatprep.subr.mxu0 0.0
    %752 = vmatpush1.xpose.msra.mxu0 0.0
    %753 = vmatprep.subr.mxu0 0.0
    %754 = vmatpush1.xpose.msra.mxu0 0.0
    %755 = vmatprep.subr.mxu0 0.0
    %756 = vmatpush1.xpose.msra.mxu0 0.0
    %757 = vmatprep.subr.mxu0 0.0
    %758 = vmatpush1.xpose.msra.mxu0 0.0
    %759 = vmatprep.subr.mxu0 0.0
    %760 = vmatpush1.xpose.msra.mxu0 0.0
    %761 = vmatprep.subr.mxu0 0.0
    %762 = vmatpush1.xpose.msra.mxu0 0.0
    %763 = vmatprep.subr.mxu0 0.0
    %764 = vmatpush1.xpose.msra.mxu0 0.0
    %765 = vmatprep.subr.mxu0 0.0
    %766 = vmatpush1.xpose.msra.mxu0 0.0
    %767 = vmatprep.subr.mxu0 0.0
    %768 = vmatpush1.xpose.msra.mxu0 0.0
    %769 = vmatprep.subr.mxu0 0.0
    %770 = vmatpush1.xpose.msra.mxu0 0.0
    %771 = vmatprep.subr.mxu0 0.0
    %772 = vmatpush1.xpose.msra.mxu0 0.0
    %773 = vmatprep.subr.mxu0 0.0
    %774 = vmatpush1.xpose.msra.mxu0 0.0
    %775 = vmatprep.subr.mxu0 0.0
    %776 = vmatpush1.xpose.msra.mxu0 0.0
    %777 = vmatprep.subr.mxu0 0.0
    %778 = vmatpush1.xpose.msra.mxu0 0.0
    %779 = vmatprep.subr.mxu0 0.0
    %780 = vmatpush1.xpose.msra.mxu0 0.0
    %781 = vmatprep.subr.mxu0 0.0
    %782 = vmatpush1.xpose.msra.mxu0 0.0
    %783 = vmatprep.subr.mxu0 0.0
    %784 = vmatpush1.xpose.msra.mxu0 0.0
    %785 = vmatprep.subr.mxu0 0.0
    %786 = vmatpush1.xpose.msra.mxu0 0.0
    %787 = vmatprep.subr.mxu0 0.0
    %788 = vmatpush1.xpose.msra.mxu0 0.0
    %789 = vmatprep.subr.mxu0 0.0
    %790 = vmatpush1.xpose.msra.mxu0 0.0
    %791 = vmatprep.subr.mxu0 0.0
    %792 = vmatpush1.xpose.msra.mxu0 0.0
    %793 = vmatprep.subr.mxu0 0.0
    %794 = vmatpush1.xpose.msra.mxu0 0.0
    %795 = vmatprep.subr.mxu0 0.0
    %796 = vmatpush1.xpose.msra.mxu0 0.0
    %797 = vmatprep.subr.mxu0 0.0
    %798 = vmatpush1.xpose.msra.mxu0 0.0
    %799 = vmatprep.subr.mxu0 0.0
    %800 = vmatpush1.xpose.msra.mxu0 0.0
    %801 = vmatprep.subr.mxu0 0.0
    %802 = vmatpush1.xpose.msra.mxu0 0.0
    %803 = vmatprep.subr.mxu0 0.0
    %804 = vmatpush1.xpose.msra.mxu0 0.0
    %805 = vmatprep.subr.mxu0 0.0
    %806 = vmatpush1.xpose.msra.mxu0 0.0
    %807 = vmatprep.mubr.f32.mxu0 0.0
    %808 = vmatmul.mubr.f32.gmra.mrb[0].mxu0 %v731
    %v809 = vpop.f32.mrb[0].mxu0
    %v810 = vadd.f32 0.0, %v809
    %v811 = vpop.f32.mrb[0].mxu0
    %812 = vmatprep.mubr.f32.mxu0 0.0
    %813 = vmatmul.mubr.f32.gmra.mrb[0].mxu0 %v733
    %v814 = vpop.f32.mrb[0].mxu0
    %v815 = vadd.f32 0.0, %v814
    %v816 = vpop.f32.mrb[0].mxu0
    %817 = vmatprep.mubr.f32.mxu0 0.0
    %818 = vmatmul.mubr.f32.gmra.mrb[0].mxu0 %v735
    %v819 = vpop.f32.mrb[0].mxu0
    %v820 = vadd.f32 0.0, %v819
    %v821 = vpop.f32.mrb[0].mxu0
    %822 = vdwg.mxu0
    %826 = vrot.lane.b32.xlu0 %v694, 96
    %v827 = vpop.permute.xlu0 %826
    %828 = vrot.lane.b32.xlu0 %v699, 96
    %v829 = vpop.permute.xlu0 %828
    %830 = vrot.lane.b32.xlu0 %v704, 96
    %v831 = vpop.permute.xlu0 %830
    %v832 = vsel %vm158, %v694, 0
    %v834 = vsel %vm158, %v699, 0
    %v836 = vsel %vm158, %v704, 0
    %v838 = vsel %vm158, %v827, 0
    %v840 = vsel %vm158, %v829, 0
    %v842 = vsel %vm158, %v831, 0
    %844 = vmatprep.subr.mxu0 0.0
    %845 = vmatpush1.xpose.msra.mxu0 %v838
    %846 = vmatprep.subr.mxu0 0.0
    %847 = vmatpush1.xpose.msra.mxu0 %v840
    %848 = vmatprep.subr.mxu0 0.0
    %849 = vmatpush1.xpose.msra.mxu0 %v842
    %850 = vmatprep.subr.mxu0 0.0
    %851 = vmatpush1.xpose.msra.mxu0 0.0
    %852 = vmatprep.subr.mxu0 0.0
    %853 = vmatpush1.xpose.msra.mxu0 0.0
    %854 = vmatprep.subr.mxu0 0.0
    %855 = vmatpush1.xpose.msra.mxu0 0.0
    %856 = vmatprep.subr.mxu0 0.0
    %857 = vmatpush1.xpose.msra.mxu0 0.0
    %858 = vmatprep.subr.mxu0 0.0
    %859 = vmatpush1.xpose.msra.mxu0 0.0
    %860 = vmatprep.subr.mxu0 0.0
    %861 = vmatpush1.xpose.msra.mxu0 0.0
    %862 = vmatprep.subr.mxu0 0.0
    %863 = vmatpush1.xpose.msra.mxu0 0.0
    %864 = vmatprep.subr.mxu0 0.0
    %865 = vmatpush1.xpose.msra.mxu0 0.0
    %866 = vmatprep.subr.mxu0 0.0
    %867 = vmatpush1.xpose.msra.mxu0 0.0
    %868 = vmatprep.subr.mxu0 0.0
    %869 = vmatpush1.xpose.msra.mxu0 0.0
    %870 = vmatprep.subr.mxu0 0.0
    %871 = vmatpush1.xpose.msra.mxu0 0.0
    %872 = vmatprep.subr.mxu0 0.0
    %873 = vmatpush1.xpose.msra.mxu0 0.0
    %874 = vmatprep.subr.mxu0 0.0
    %875 = vmatpush1.xpose.msra.mxu0 0.0
    %876 = vmatprep.subr.mxu0 0.0
    %877 = vmatpush1.xpose.msra.mxu0 0.0
    %878 = vmatprep.subr.mxu0 0.0
    %879 = vmatpush1.xpose.msra.mxu0 0.0
    %880 = vmatprep.subr.mxu0 0.0
    %881 = vmatpush1.xpose.msra.mxu0 0.0
    %882 = vmatprep.subr.mxu0 0.0
    %883 = vmatpush1.xpose.msra.mxu0 0.0
    %884 = vmatprep.subr.mxu0 0.0
    %885 = vmatpush1.xpose.msra.mxu0 0.0
    %886 = vmatprep.subr.mxu0 0.0
    %887 = vmatpush1.xpose.msra.mxu0 0.0
    %888 = vmatprep.subr.mxu0 0.0
    %889 = vmatpush1.xpose.msra.mxu0 0.0
    %890 = vmatprep.subr.mxu0 0.0
    %891 = vmatpush1.xpose.msra.mxu0 0.0
    %892 = vmatprep.subr.mxu0 0.0
    %893 = vmatpush1.xpose.msra.mxu0 0.0
    %894 = vmatprep.subr.mxu0 0.0
    %895 = vmatpush1.xpose.msra.mxu0 0.0
    %896 = vmatprep.subr.mxu0 0.0
    %897 = vmatpush1.xpose.msra.mxu0 0.0
    %898 = vmatprep.subr.mxu0 0.0
    %899 = vmatpush1.xpose.msra.mxu0 0.0
    %900 = vmatprep.subr.mxu0 0.0
    %901 = vmatpush1.xpose.msra.mxu0 0.0
    %902 = vmatprep.subr.mxu0 0.0
    %903 = vmatpush1.xpose.msra.mxu0 0.0
    %904 = vmatprep.subr.mxu0 0.0
    %905 = vmatpush1.xpose.msra.mxu0 0.0
    %906 = vmatprep.subr.mxu0 0.0
    %907 = vmatpush1.xpose.msra.mxu0 0.0
    %908 = vmatprep.mubr.f32.mxu0 0.0
    %909 = vmatmul.mubr.f32.gmra.mrb[0].mxu0 %v832
    %v910 = vpop.f32.mrb[0].mxu0
    %v911 = vadd.f32 0.0, %v910
    %v912 = vpop.f32.mrb[0].mxu0
    %913 = vmatprep.mubr.f32.mxu0 0.0
    %914 = vmatmul.mubr.f32.gmra.mrb[0].mxu0 %v834
    %v915 = vpop.f32.mrb[0].mxu0
    %v916 = vadd.f32 0.0, %v915
    %v917 = vpop.f32.mrb[0].mxu0
    %918 = vmatprep.mubr.f32.mxu0 0.0
    %919 = vmatmul.mubr.f32.gmra.mrb[0].mxu0 %v836
    %v920 = vpop.f32.mrb[0].mxu0
    %v921 = vadd.f32 0.0, %v920
    %v922 = vpop.f32.mrb[0].mxu0
    %923 = vdwg.mxu0
    %927 = vrot.lane.b32.xlu0 %v709, 96
    %v928 = vpop.permute.xlu0 %927
    %929 = vrot.lane.b32.xlu0 %v714, 96
    %v930 = vpop.permute.xlu0 %929
    %931 = vrot.lane.b32.xlu0 %v719, 96
    %v932 = vpop.permute.xlu0 %931
    %v933 = vsel %vm158, %v709, 0
    %v935 = vsel %vm158, %v714, 0
    %v937 = vsel %vm158, %v719, 0
    %v939 = vsel %vm158, %v928, 0
    %v941 = vsel %vm158, %v930, 0
    %v943 = vsel %vm158, %v932, 0
    %945 = vmatprep.subr.mxu0 0.0
    %946 = vmatpush1.xpose.msra.mxu0 %v939
    %947 = vmatprep.subr.mxu0 0.0
    %948 = vmatpush1.xpose.msra.mxu0 %v941
    %949 = vmatprep.subr.mxu0 0.0
    %950 = vmatpush1.xpose.msra.mxu0 %v943
    %951 = vmatprep.subr.mxu0 0.0
    %952 = vmatpush1.xpose.msra.mxu0 0.0
    %953 = vmatprep.subr.mxu0 0.0
    %954 = vmatpush1.xpose.msra.mxu0 0.0
    %955 = vmatprep.subr.mxu0 0.0
    %956 = vmatpush1.xpose.msra.mxu0 0.0
    %957 = vmatprep.subr.mxu0 0.0
    %958 = vmatpush1.xpose.msra.mxu0 0.0
    %959 = vmatprep.subr.mxu0 0.0
    %960 = vmatpush1.xpose.msra.mxu0 0.0
    %961 = vmatprep.subr.mxu0 0.0
    %962 = vmatpush1.xpose.msra.mxu0 0.0
    %963 = vmatprep.subr.mxu0 0.0
    %964 = vmatpush1.xpose.msra.mxu0 0.0
    %965 = vmatprep.subr.mxu0 0.0
    %966 = vmatpush1.xpose.msra.mxu0 0.0
    %967 = vmatprep.subr.mxu0 0.0
    %968 = vmatpush1.xpose.msra.mxu0 0.0
    %969 = vmatprep.subr.mxu0 0.0
    %970 = vmatpush1.xpose.msra.mxu0 0.0
    %971 = vmatprep.subr.mxu0 0.0
    %972 = vmatpush1.xpose.msra.mxu0 0.0
    %973 = vmatprep.subr.mxu0 0.0
    %974 = vmatpush1.xpose.msra.mxu0 0.0
    %975 = vmatprep.subr.mxu0 0.0
    %976 = vmatpush1.xpose.msra.mxu0 0.0
    %977 = vmatprep.subr.mxu0 0.0
    %978 = vmatpush1.xpose.msra.mxu0 0.0
    %979 = vmatprep.subr.mxu0 0.0
    %980 = vmatpush1.xpose.msra.mxu0 0.0
    %981 = vmatprep.subr.mxu0 0.0
    %982 = vmatpush1.xpose.msra.mxu0 0.0
    %983 = vmatprep.subr.mxu0 0.0
    %984 = vmatpush1.xpose.msra.mxu0 0.0
    %985 = vmatprep.subr.mxu0 0.0
    %986 = vmatpush1.xpose.msra.mxu0 0.0
    %987 = vmatprep.subr.mxu0 0.0
    %988 = vmatpush1.xpose.msra.mxu0 0.0
    %989 = vmatprep.subr.mxu0 0.0
    %990 = vmatpush1.xpose.msra.mxu0 0.0
    %991 = vmatprep.subr.mxu0 0.0
    %992 = vmatpush1.xpose.msra.mxu0 0.0
    %993 = vmatprep.subr.mxu0 0.0
    %994 = vmatpush1.xpose.msra.mxu0 0.0
    %995 = vmatprep.subr.mxu0 0.0
    %996 = vmatpush1.xpose.msra.mxu0 0.0
    %997 = vmatprep.subr.mxu0 0.0
    %998 = vmatpush1.xpose.msra.mxu0 0.0
    %999 = vmatprep.subr.mxu0 0.0
    %1000 = vmatpush1.xpose.msra.mxu0 0.0
    %1001 = vmatprep.subr.mxu0 0.0
    %1002 = vmatpush1.xpose.msra.mxu0 0.0
    %1003 = vmatprep.subr.mxu0 0.0
    %1004 = vmatpush1.xpose.msra.mxu0 0.0
    %1005 = vmatprep.subr.mxu0 0.0
    %1006 = vmatpush1.xpose.msra.mxu0 0.0
    %1007 = vmatprep.subr.mxu0 0.0
    %1008 = vmatpush1.xpose.msra.mxu0 0.0
    %1009 = vmatprep.mubr.f32.mxu0 0.0
    %1010 = vmatmul.mubr.f32.gmra.mrb[0].mxu0 %v933
    %v1011 = vpop.f32.mrb[0].mxu0
    %v1012 = vadd.f32 0.0, %v1011
    %v1013 = vpop.f32.mrb[0].mxu0
    %1014 = vmatprep.mubr.f32.mxu0 0.0
    %1015 = vmatmul.mubr.f32.gmra.mrb[0].mxu0 %v935
    %v1016 = vpop.f32.mrb[0].mxu0
    %v1017 = vadd.f32 0.0, %v1016
    %v1018 = vpop.f32.mrb[0].mxu0
    %1019 = vmatprep.mubr.f32.mxu0 0.0
    %1020 = vmatmul.mubr.f32.gmra.mrb[0].mxu0 %v937
    %v1021 = vpop.f32.mrb[0].mxu0
    %v1022 = vadd.f32 0.0, %v1021
    %v1023 = vpop.f32.mrb[0].mxu0
    %1024 = vdwg.mxu0
    %v1025 = vmul.f32 %v810, 0.17677669
    %v1026 = vmul.f32 %v815, 0.17677669
    %v1027 = vmul.f32 %v820, 0.17677669
    %v1028 = vmul.f32 %v911, 0.17677669
    %v1029 = vmul.f32 %v916, 0.17677669
    %v1030 = vmul.f32 %v921, 0.17677669
    %v1031 = vmul.f32 %v1012, 0.17677669
    %v1032 = vmul.f32 %v1017, 0.17677669
    %v1033 = vmul.f32 %v1022, 0.17677669
    %v1034 = vsel %vm295, %v1025, -inf
    %1035 = vmax.xlane.f32.xlu0 %v1034
    %v1036 = vpop.xlane.xlu0 %1035
    %v1037 = vsel %vm295, %v1026, -inf
    %1038 = vmax.xlane.f32.xlu0 %v1037
    %v1039 = vpop.xlane.xlu0 %1038
    %v1040 = vsel %vm295, %v1027, -inf
    %1041 = vmax.xlane.f32.xlu0 %v1040
    %v1042 = vpop.xlane.xlu0 %1041
    %v1043 = vsel %vm295, %v1028, -inf
    %1044 = vmax.xlane.f32.xlu0 %v1043
    %v1045 = vpop.xlane.xlu0 %1044
    %v1046 = vsel %vm295, %v1029, -inf
    %1047 = vmax.xlane.f32.xlu0 %v1046
    %v1048 = vpop.xlane.xlu0 %1047
    %v1049 = vsel %vm295, %v1030, -inf
    %1050 = vmax.xlane.f32.xlu0 %v1049
    %v1051 = vpop.xlane.xlu0 %1050
    %v1052 = vsel %vm295, %v1031, -inf
    %1053 = vmax.xlane.f32.xlu0 %v1052
    %v1054 = vpop.xlane.xlu0 %1053
    %v1055 = vsel %vm295, %v1032, -inf
    %1056 = vmax.xlane.f32.xlu0 %v1055
    %v1057 = vpop.xlane.xlu0 %1056
    %v1058 = vsel %vm295, %v1033, -inf
    %1059 = vmax.xlane.f32.xlu0 %v1058
    %v1060 = vpop.xlane.xlu0 %1059
    %v1061 = vsub.f32 %v1025, %v1036
    %v1062 = vsub.f32 %v1026, %v1039
    %v1063 = vsub.f32 %v1027, %v1042
    %v1064 = vsub.f32 %v1028, %v1045
    %v1065 = vsub.f32 %v1029, %v1048
    %v1066 = vsub.f32 %v1030, %v1051
    %v1067 = vsub.f32 %v1031, %v1054
    %v1068 = vsub.f32 %v1032, %v1057
    %v1069 = vsub.f32 %v1033, %v1060
    %v1070 = vmul.f32 %v1061, 1.442695
    %v1071 = vpow.pop %v1070
    %v1072 = vmul.f32 %v1062, 1.442695
    %v1073 = vpow.pop %v1072
    %v1074 = vmul.f32 %v1063, 1.442695
    %v1075 = vpow.pop %v1074
    %v1076 = vmul.f32 %v1064, 1.442695
    %v1077 = vpow.pop %v1076
    %v1078 = vmul.f32 %v1065, 1.442695
    %v1079 = vpow.pop %v1078
    %v1080 = vmul.f32 %v1066, 1.442695
    %v1081 = vpow.pop %v1080
    %v1082 = vmul.f32 %v1067, 1.442695
    %v1083 = vpow.pop %v1082
    %v1084 = vmul.f32 %v1068, 1.442695
    %v1085 = vpow.pop %v1084
    %v1086 = vmul.f32 %v1069, 1.442695
    %v1087 = vpow.pop %v1086
    %v1088 = vsel %vm295, %v1071, 0.0
    %1089 = vadd.xlane.f32.xlu0 %v1088
    %v1090 = vpop.xlane.xlu0 %1089
    %v1091 = vsel %vm295, %v1073, 0.0
    %1092 = vadd.xlane.f32.xlu0 %v1091
    %v1093 = vpop.xlane.xlu0 %1092
    %v1094 = vsel %vm295, %v1075, 0.0
    %1095 = vadd.xlane.f32.xlu0 %v1094
    %v1096 = vpop.xlane.xlu0 %1095
    %v1097 = vsel %vm295, %v1077, 0.0
    %1098 = vadd.xlane.f32.xlu0 %v1097
    %v1099 = vpop.xlane.xlu0 %1098
    %v1100 = vsel %vm295, %v1079, 0.0
    %1101 = vadd.xlane.f32.xlu0 %v1100
    %v1102 = vpop.xlane.xlu0 %1101
    %v1103 = vsel %vm295, %v1081, 0.0
    %1104 = vadd.xlane.f32.xlu0 %v1103
    %v1105 = vpop.xlane.xlu0 %1104
    %v1106 = vsel %vm295, %v1083, 0.0
    %1107 = vadd.xlane.f32.xlu0 %v1106
    %v1108 = vpop.xlane.xlu0 %1107
    %v1109 = vsel %vm295, %v1085, 0.0
    %1110 = vadd.xlane.f32.xlu0 %v1109
    %v1111 = vpop.xlane.xlu0 %1110
    %v1112 = vsel %vm295, %v1087, 0.0
    %1113 = vadd.xlane.f32.xlu0 %v1112
    %v1114 = vpop.xlane.xlu0 %1113
    %v1115 = vrcp.pop %v1090
    %v1116 = vrcp.pop %v1093
    %v1117 = vrcp.pop %v1096
    %v1118 = vrcp.pop %v1099
    %v1119 = vrcp.pop %v1102
    %v1120 = vrcp.pop %v1105
    %v1121 = vrcp.pop %v1108
    %v1122 = vrcp.pop %v1111
    %v1123 = vrcp.pop %v1114
    %v1124 = vmul.f32 %v1071, %v1115
    %v1125 = vmul.f32 %v1073, %v1116
    %v1126 = vmul.f32 %v1075, %v1117
    %v1127 = vmul.f32 %v1077, %v1118
    %v1128 = vmul.f32 %v1079, %v1119
    %v1129 = vmul.f32 %v1081, %v1120
    %v1130 = vmul.f32 %v1083, %v1121
    %v1131 = vmul.f32 %v1085, %v1122
    %v1132 = vmul.f32 %v1087, %v1123
    %1133 = vrot.lane.b32.xlu0 %v679, 64
    %v1134 = vpop.permute.xlu0 %1133
    %1135 = vrot.lane.b32.xlu0 %v684, 64
    %v1136 = vpop.permute.xlu0 %1135
    %1137 = vrot.lane.b32.xlu0 %v689, 64
    %v1138 = vpop.permute.xlu0 %1137
    %v1143 = vsel %vm295, %v1124, 0
    %v1146 = vsel %vm295, %v1125, 0
    %v1149 = vsel %vm295, %v1126, 0
    %1151 = vmatprep.subr.mxu0 0.0
    %1152 = vmatpush1.msra.mxu0 %v1134
    %1153 = vmatprep.subr.mxu0 0.0
    %1154 = vmatpush1.msra.mxu0 %v1136
    %1155 = vmatprep.subr.mxu0 0.0
    %1156 = vmatpush1.msra.mxu0 %v1138
    %1157 = vmatprep.subr.mxu0 0.0
    %1158 = vmatpush1.msra.mxu0 0.0
    %1159 = vmatprep.subr.mxu0 0.0
    %1160 = vmatpush1.msra.mxu0 0.0
    %1161 = vmatprep.subr.mxu0 0.0
    %1162 = vmatpush1.msra.mxu0 0.0
    %1163 = vmatprep.subr.mxu0 0.0
    %1164 = vmatpush1.msra.mxu0 0.0
    %1165 = vmatprep.subr.mxu0 0.0
    %1166 = vmatpush1.msra.mxu0 0.0
    %1167 = vmatprep.subr.mxu0 0.0
    %1168 = vmatpush1.msra.mxu0 0.0
    %1169 = vmatprep.subr.mxu0 0.0
    %1170 = vmatpush1.msra.mxu0 0.0
    %1171 = vmatprep.subr.mxu0 0.0
    %1172 = vmatpush1.msra.mxu0 0.0
    %1173 = vmatprep.subr.mxu0 0.0
    %1174 = vmatpush1.msra.mxu0 0.0
    %1175 = vmatprep.subr.mxu0 0.0
    %1176 = vmatpush1.msra.mxu0 0.0
    %1177 = vmatprep.subr.mxu0 0.0
    %1178 = vmatpush1.msra.mxu0 0.0
    %1179 = vmatprep.subr.mxu0 0.0
    %1180 = vmatpush1.msra.mxu0 0.0
    %1181 = vmatprep.subr.mxu0 0.0
    %1182 = vmatpush1.msra.mxu0 0.0
    %1183 = vmatprep.subr.mxu0 0.0
    %1184 = vmatpush1.msra.mxu0 0.0
    %1185 = vmatprep.subr.mxu0 0.0
    %1186 = vmatpush1.msra.mxu0 0.0
    %1187 = vmatprep.subr.mxu0 0.0
    %1188 = vmatpush1.msra.mxu0 0.0
    %1189 = vmatprep.subr.mxu0 0.0
    %1190 = vmatpush1.msra.mxu0 0.0
    %1191 = vmatprep.subr.mxu0 0.0
    %1192 = vmatpush1.msra.mxu0 0.0
    %1193 = vmatprep.subr.mxu0 0.0
    %1194 = vmatpush1.msra.mxu0 0.0
    %1195 = vmatprep.subr.mxu0 0.0
    %1196 = vmatpush1.msra.mxu0 0.0
    %1197 = vmatprep.subr.mxu0 0.0
    %1198 = vmatpush1.msra.mxu0 0.0
    %1199 = vmatprep.subr.mxu0 0.0
    %1200 = vmatpush1.msra.mxu0 0.0
    %1201 = vmatprep.subr.mxu0 0.0
    %1202 = vmatpush1.msra.mxu0 0.0
    %1203 = vmatprep.subr.mxu0 0.0
    %1204 = vmatpush1.msra.mxu0 0.0
    %1205 = vmatprep.subr.mxu0 0.0
    %1206 = vmatpush1.msra.mxu0 0.0
    %1207 = vmatprep.subr.mxu0 0.0
    %1208 = vmatpush1.msra.mxu0 0.0
    %1209 = vmatprep.subr.mxu0 0.0
    %1210 = vmatpush1.msra.mxu0 0.0
    %1211 = vmatprep.subr.mxu0 0.0
    %1212 = vmatpush1.msra.mxu0 0.0
    %1213 = vmatprep.subr.mxu0 0.0
    %1214 = vmatpush1.msra.mxu0 0.0
    %1215 = vmatprep.mubr.f32.mxu0 0.0
    %1216 = vmatmul.mubr.f32.gmra.mrb[0].mxu0 %v1143
    %v1217 = vpop.f32.mrb[0].mxu0
    %v1218 = vadd.f32 0.0, %v1217
    %v1219 = vpop.f32.mrb[0].mxu0
    %1220 = vmatprep.mubr.f32.mxu0 0.0
    %1221 = vmatmul.mubr.f32.gmra.mrb[0].mxu0 %v1146
    %v1222 = vpop.f32.mrb[0].mxu0
    %v1223 = vadd.f32 0.0, %v1222
    %v1224 = vpop.f32.mrb[0].mxu0
    %1225 = vmatprep.mubr.f32.mxu0 0.0
    %1226 = vmatmul.mubr.f32.gmra.mrb[0].mxu0 %v1149
    %v1227 = vpop.f32.mrb[0].mxu0
    %v1228 = vadd.f32 0.0, %v1227
    %v1229 = vpop.f32.mrb[0].mxu0
    %1230 = vdwg.mxu0
    %1231 = vrot.lane.b32.xlu0 %v694, 64
    %v1232 = vpop.permute.xlu0 %1231
    %1233 = vrot.lane.b32.xlu0 %v699, 64
    %v1234 = vpop.permute.xlu0 %1233
    %1235 = vrot.lane.b32.xlu0 %v704, 64
    %v1236 = vpop.permute.xlu0 %1235
    %v1241 = vsel %vm295, %v1127, 0
    %v1244 = vsel %vm295, %v1128, 0
    %v1247 = vsel %vm295, %v1129, 0
    %1249 = vmatprep.subr.mxu0 0.0
    %1250 = vmatpush1.msra.mxu0 %v1232
    %1251 = vmatprep.subr.mxu0 0.0
    %1252 = vmatpush1.msra.mxu0 %v1234
    %1253 = vmatprep.subr.mxu0 0.0
    %1254 = vmatpush1.msra.mxu0 %v1236
    %1255 = vmatprep.subr.mxu0 0.0
    %1256 = vmatpush1.msra.mxu0 0.0
    %1257 = vmatprep.subr.mxu0 0.0
    %1258 = vmatpush1.msra.mxu0 0.0
    %1259 = vmatprep.subr.mxu0 0.0
    %1260 = vmatpush1.msra.mxu0 0.0
    %1261 = vmatprep.subr.mxu0 0.0
    %1262 = vmatpush1.msra.mxu0 0.0
    %1263 = vmatprep.subr.mxu0 0.0
    %1264 = vmatpush1.msra.mxu0 0.0
    %1265 = vmatprep.subr.mxu0 0.0
    %1266 = vmatpush1.msra.mxu0 0.0
    %1267 = vmatprep.subr.mxu0 0.0
    %1268 = vmatpush1.msra.mxu0 0.0
    %1269 = vmatprep.subr.mxu0 0.0
    %1270 = vmatpush1.msra.mxu0 0.0
    %1271 = vmatprep.subr.mxu0 0.0
    %1272 = vmatpush1.msra.mxu0 0.0
    %1273 = vmatprep.subr.mxu0 0.0
    %1274 = vmatpush1.msra.mxu0 0.0
    %1275 = vmatprep.subr.mxu0 0.0
    %1276 = vmatpush1.msra.mxu0 0.0
    %1277 = vmatprep.subr.mxu0 0.0
    %1278 = vmatpush1.msra.mxu0 0.0
    %1279 = vmatprep.subr.mxu0 0.0
    %1280 = vmatpush1.msra.mxu0 0.0
    %1281 = vmatprep.subr.mxu0 0.0
    %1282 = vmatpush1.msra.mxu0 0.0
    %1283 = vmatprep.subr.mxu0 0.0
    %1284 = vmatpush1.msra.mxu0 0.0
    %1285 = vmatprep.subr.mxu0 0.0
    %1286 = vmatpush1.msra.mxu0 0.0
    %1287 = vmatprep.subr.mxu0 0.0
    %1288 = vmatpush1.msra.mxu0 0.0
    %1289 = vmatprep.subr.mxu0 0.0
    %1290 = vmatpush1.msra.mxu0 0.0
    %1291 = vmatprep.subr.mxu0 0.0
    %1292 = vmatpush1.msra.mxu0 0.0
    %1293 = vmatprep.subr.mxu0 0.0
    %1294 = vmatpush1.msra.mxu0 0.0
    %1295 = vmatprep.subr.mxu0 0.0
    %1296 = vmatpush1.msra.mxu0 0.0
    %1297 = vmatprep.subr.mxu0 0.0
    %1298 = vmatpush1.msra.mxu0 0.0
    %1299 = vmatprep.subr.mxu0 0.0
    %1300 = vmatpush1.msra.mxu0 0.0
    %1301 = vmatprep.subr.mxu0 0.0
    %1302 = vmatpush1.msra.mxu0 0.0
    %1303 = vmatprep.subr.mxu0 0.0
    %1304 = vmatpush1.msra.mxu0 0.0
    %1305 = vmatprep.subr.mxu0 0.0
    %1306 = vmatpush1.msra.mxu0 0.0
    %1307 = vmatprep.subr.mxu0 0.0
    %1308 = vmatpush1.msra.mxu0 0.0
    %1309 = vmatprep.subr.mxu0 0.0
    %1310 = vmatpush1.msra.mxu0 0.0
    %1311 = vmatprep.subr.mxu0 0.0
    %1312 = vmatpush1.msra.mxu0 0.0
    %1313 = vmatprep.mubr.f32.mxu0 0.0
    %1314 = vmatmul.mubr.f32.gmra.mrb[0].mxu0 %v1241
    %v1315 = vpop.f32.mrb[0].mxu0
    %v1316 = vadd.f32 0.0, %v1315
    %v1317 = vpop.f32.mrb[0].mxu0
    %1318 = vmatprep.mubr.f32.mxu0 0.0
    %1319 = vmatmul.mubr.f32.gmra.mrb[0].mxu0 %v1244
    %v1320 = vpop.f32.mrb[0].mxu0
    %v1321 = vadd.f32 0.0, %v1320
    %v1322 = vpop.f32.mrb[0].mxu0
    %1323 = vmatprep.mubr.f32.mxu0 0.0
    %1324 = vmatmul.mubr.f32.gmra.mrb[0].mxu0 %v1247
    %v1325 = vpop.f32.mrb[0].mxu0
    %v1326 = vadd.f32 0.0, %v1325
    %v1327 = vpop.f32.mrb[0].mxu0
    %1328 = vdwg.mxu0
    %1329 = vrot.lane.b32.xlu0 %v709, 64
    %v1330 = vpop.permute.xlu0 %1329
    %1331 = vrot.lane.b32.xlu0 %v714, 64
    %v1332 = vpop.permute.xlu0 %1331
    %1333 = vrot.lane.b32.xlu0 %v719, 64
    %v1334 = vpop.permute.xlu0 %1333
    %v1339 = vsel %vm295, %v1130, 0
    %v1342 = vsel %vm295, %v1131, 0
    %v1345 = vsel %vm295, %v1132, 0
    %1347 = vmatprep.subr.mxu0 0.0
    %1348 = vmatpush1.msra.mxu0 %v1330
    %1349 = vmatprep.subr.mxu0 0.0
    %1350 = vmatpush1.msra.mxu0 %v1332
    %1351 = vmatprep.subr.mxu0 0.0
    %1352 = vmatpush1.msra.mxu0 %v1334
    %1353 = vmatprep.subr.mxu0 0.0
    %1354 = vmatpush1.msra.mxu0 0.0
    %1355 = vmatprep.subr.mxu0 0.0
    %1356 = vmatpush1.msra.mxu0 0.0
    %1357 = vmatprep.subr.mxu0 0.0
    %1358 = vmatpush1.msra.mxu0 0.0
    %1359 = vmatprep.subr.mxu0 0.0
    %1360 = vmatpush1.msra.mxu0 0.0
    %1361 = vmatprep.subr.mxu0 0.0
    %1362 = vmatpush1.msra.mxu0 0.0
    %1363 = vmatprep.subr.mxu0 0.0
    %1364 = vmatpush1.msra.mxu0 0.0
    %1365 = vmatprep.subr.mxu0 0.0
    %1366 = vmatpush1.msra.mxu0 0.0
    %1367 = vmatprep.subr.mxu0 0.0
    %1368 = vmatpush1.msra.mxu0 0.0
    %1369 = vmatprep.subr.mxu0 0.0
    %1370 = vmatpush1.msra.mxu0 0.0
    %1371 = vmatprep.subr.mxu0 0.0
    %1372 = vmatpush1.msra.mxu0 0.0
    %1373 = vmatprep.subr.mxu0 0.0
    %1374 = vmatpush1.msra.mxu0 0.0
    %1375 = vmatprep.subr.mxu0 0.0
    %1376 = vmatpush1.msra.mxu0 0.0
    %1377 = vmatprep.subr.mxu0 0.0
    %1378 = vmatpush1.msra.mxu0 0.0
    %1379 = vmatprep.subr.mxu0 0.0
    %1380 = vmatpush1.msra.mxu0 0.0
    %1381 = vmatprep.subr.mxu0 0.0
    %1382 = vmatpush1.msra.mxu0 0.0
    %1383 = vmatprep.subr.mxu0 0.0
    %1384 = vmatpush1.msra.mxu0 0.0
    %1385 = vmatprep.subr.mxu0 0.0
    %1386 = vmatpush1.msra.mxu0 0.0
    %1387 = vmatprep.subr.mxu0 0.0
    %1388 = vmatpush1.msra.mxu0 0.0
    %1389 = vmatprep.subr.mxu0 0.0
    %1390 = vmatpush1.msra.mxu0 0.0
    %1391 = vmatprep.subr.mxu0 0.0
    %1392 = vmatpush1.msra.mxu0 0.0
    %1393 = vmatprep.subr.mxu0 0.0
    %1394 = vmatpush1.msra.mxu0 0.0
    %1395 = vmatprep.subr.mxu0 0.0
    %1396 = vmatpush1.msra.mxu0 0.0
    %1397 = vmatprep.subr.mxu0 0.0
    %1398 = vmatpush1.msra.mxu0 0.0
    %1399 = vmatprep.subr.mxu0 0.0
    %1400 = vmatpush1.msra.mxu0 0.0
    %1401 = vmatprep.subr.mxu0 0.0
    %1402 = vmatpush1.msra.mxu0 0.0
    %1403 = vmatprep.subr.mxu0 0.0
    %1404 = vmatpush1.msra.mxu0 0.0
    %1405 = vmatprep.subr.mxu0 0.0
    %1406 = vmatpush1.msra.mxu0 0.0
    %1407 = vmatprep.subr.mxu0 0.0
    %1408 = vmatpush1.msra.mxu0 0.0
    %1409 = vmatprep.subr.mxu0 0.0
    %1410 = vmatpush1.msra.mxu0 0.0
    %1411 = vmatprep.mubr.f32.mxu0 0.0
    %1412 = vmatmul.mubr.f32.gmra.mrb[0].mxu0 %v1339
    %v1413 = vpop.f32.mrb[0].mxu0
    %v1414 = vadd.f32 0.0, %v1413
    %v1415 = vpop.f32.mrb[0].mxu0
    %1416 = vmatprep.mubr.f32.mxu0 0.0
    %1417 = vmatmul.mubr.f32.gmra.mrb[0].mxu0 %v1342
    %v1418 = vpop.f32.mrb[0].mxu0
    %v1419 = vadd.f32 0.0, %v1418
    %v1420 = vpop.f32.mrb[0].mxu0
    %1421 = vmatprep.mubr.f32.mxu0 0.0
    %1422 = vmatmul.mubr.f32.gmra.mrb[0].mxu0 %v1345
    %v1423 = vpop.f32.mrb[0].mxu0
    %v1424 = vadd.f32 0.0, %v1423
    %v1425 = vpop.f32.mrb[0].mxu0
    %1426 = vdwg.mxu0
    %v1427 = vld [vmem:[#allocation5] sm:$0xff]
    %v1428 = vld [vmem:[#allocation5 + $0x8] sm:$0xff]
    %v1429 = vld [vmem:[#allocation5 + $0x10] sm:$0xff]
    %v1430 = vld [vmem:[#allocation5 + $0x18] sm:$0xff]
    %v1431 = vlaneseq
    %v1432 = vshrl.u32 %v1431, 7
    %v1433 = vsub.s32 2, %v1432
    %v1434 = vrot.slane %v58, %v1433
    %v1436 = vsel %vm158, %v1218, 0
    %v1439 = vsel %vm158, %v1223, 0
    %v1442 = vsel %vm158, %v1228, 0
    %v1445 = vsel %vm158, %v1316, 0
    %v1448 = vsel %vm158, %v1321, 0
    %v1451 = vsel %vm158, %v1326, 0
    %v1454 = vsel %vm158, %v1414, 0
    %v1457 = vsel %vm158, %v1419, 0
    %v1460 = vsel %vm158, %v1424, 0
    %1462 = vmatprep.subr.mxu0 0.0
    %1463 = vmatpush1.msra.mxu0 %v1427
    %1464 = vmatprep.subr.mxu0 0.0
    %1465 = vmatpush1.msra.mxu0 %v1428
    %1466 = vmatprep.subr.mxu0 0.0
    %1467 = vmatpush1.msra.mxu0 %v1429
    %1468 = vmatprep.subr.mxu0 0.0
    %1469 = vmatpush1.msra.mxu0 %v1430
    %1470 = vmatprep.subr.mxu0 0.0
    %1471 = vmatpush1.msra.mxu0 0.0
    %1472 = vmatprep.subr.mxu0 0.0
    %1473 = vmatpush1.msra.mxu0 0.0
    %1474 = vmatprep.subr.mxu0 0.0
    %1475 = vmatpush1.msra.mxu0 0.0
    %1476 = vmatprep.subr.mxu0 0.0
    %1477 = vmatpush1.msra.mxu0 0.0
    %1478 = vmatprep.subr.mxu0 0.0
    %1479 = vmatpush1.msra.mxu0 0.0
    %1480 = vmatprep.subr.mxu0 0.0
    %1481 = vmatpush1.msra.mxu0 0.0
    %1482 = vmatprep.subr.mxu0 0.0
    %1483 = vmatpush1.msra.mxu0 0.0
    %1484 = vmatprep.subr.mxu0 0.0
    %1485 = vmatpush1.msra.mxu0 0.0
    %1486 = vmatprep.subr.mxu0 0.0
    %1487 = vmatpush1.msra.mxu0 0.0
    %1488 = vmatprep.subr.mxu0 0.0
    %1489 = vmatpush1.msra.mxu0 0.0
    %1490 = vmatprep.subr.mxu0 0.0
    %1491 = vmatpush1.msra.mxu0 0.0
    %1492 = vmatprep.subr.mxu0 0.0
    %1493 = vmatpush1.msra.mxu0 0.0
    %1494 = vmatprep.subr.mxu0 0.0
    %1495 = vmatpush1.msra.mxu0 0.0
    %1496 = vmatprep.subr.mxu0 0.0
    %1497 = vmatpush1.msra.mxu0 0.0
    %1498 = vmatprep.subr.mxu0 0.0
    %1499 = vmatpush1.msra.mxu0 0.0
    %1500 = vmatprep.subr.mxu0 0.0
    %1501 = vmatpush1.msra.mxu0 0.0
    %1502 = vmatprep.subr.mxu0 0.0
    %1503 = vmatpush1.msra.mxu0 0.0
    %1504 = vmatprep.subr.mxu0 0.0
    %1505 = vmatpush1.msra.mxu0 0.0
    %1506 = vmatprep.subr.mxu0 0.0
    %1507 = vmatpush1.msra.mxu0 0.0
    %1508 = vmatprep.subr.mxu0 0.0
    %1509 = vmatpush1.msra.mxu0 0.0
    %1510 = vmatprep.subr.mxu0 0.0
    %1511 = vmatpush1.msra.mxu0 0.0
    %1512 = vmatprep.subr.mxu0 0.0
    %1513 = vmatpush1.msra.mxu0 0.0
    %1514 = vmatprep.subr.mxu0 0.0
    %1515 = vmatpush1.msra.mxu0 0.0
    %1516 = vmatprep.subr.mxu0 0.0
    %1517 = vmatpush1.msra.mxu0 0.0
    %1518 = vmatprep.subr.mxu0 0.0
    %1519 = vmatpush1.msra.mxu0 0.0
    %1520 = vmatprep.subr.mxu0 0.0
    %1521 = vmatpush1.msra.mxu0 0.0
    %1522 = vmatprep.subr.mxu0 0.0
    %1523 = vmatpush1.msra.mxu0 0.0
    %1524 = vmatprep.subr.mxu0 0.0
    %1525 = vmatpush1.msra.mxu0 0.0
    %1526 = vmatprep.mubr.f32.mxu0 0.0
    %1527 = vmatmul.mubr.f32.gmra.mrb[0].mxu0 %v1436
    %v1528 = vpop.f32.mrb[0].mxu0
    %v1529 = vadd.f32 %v1434, %v1528
    %v1530 = vpop.f32.mrb[0].mxu0
    %1531 = vmatprep.mubr.f32.mxu0 0.0
    %1532 = vmatmul.mubr.f32.gmra.mrb[0].mxu0 %v1439
    %v1533 = vpop.f32.mrb[0].mxu0
    %v1534 = vadd.f32 %v1434, %v1533
    %v1535 = vpop.f32.mrb[0].mxu0
    %1536 = vmatprep.mubr.f32.mxu0 0.0
    %1537 = vmatmul.mubr.f32.gmra.mrb[0].mxu0 %v1442
    %v1538 = vpop.f32.mrb[0].mxu0
    %v1539 = vadd.f32 %v1434, %v1538
    %v1540 = vpop.f32.mrb[0].mxu0
    %1541 = vmatprep.mubr.f32.mxu0 0.0
    %1542 = vmatmul.mubr.f32.gmra.mrb[0].mxu0 %v1445
    %v1543 = vpop.f32.mrb[0].mxu0
    %v1544 = vadd.f32 %v1434, %v1543
    %v1545 = vpop.f32.mrb[0].mxu0
    %1546 = vmatprep.mubr.f32.mxu0 0.0
    %1547 = vmatmul.mubr.f32.gmra.mrb[0].mxu0 %v1448
    %v1548 = vpop.f32.mrb[0].mxu0
    %v1549 = vadd.f32 %v1434, %v1548
    %v1550 = vpop.f32.mrb[0].mxu0
    %1551 = vmatprep.mubr.f32.mxu0 0.0
    %1552 = vmatmul.mubr.f32.gmra.mrb[0].mxu0 %v1451
    %v1553 = vpop.f32.mrb[0].mxu0
    %v1554 = vadd.f32 %v1434, %v1553
    %v1555 = vpop.f32.mrb[0].mxu0
    %1556 = vmatprep.mubr.f32.mxu0 0.0
    %1557 = vmatmul.mubr.f32.gmra.mrb[0].mxu0 %v1454
    %v1558 = vpop.f32.mrb[0].mxu0
    %v1559 = vadd.f32 %v1434, %v1558
    %v1560 = vpop.f32.mrb[0].mxu0
    %1561 = vmatprep.mubr.f32.mxu0 0.0
    %1562 = vmatmul.mubr.f32.gmra.mrb[0].mxu0 %v1457
    %v1563 = vpop.f32.mrb[0].mxu0
    %v1564 = vadd.f32 %v1434, %v1563
    %v1565 = vpop.f32.mrb[0].mxu0
    %1566 = vmatprep.mubr.f32.mxu0 0.0
    %1567 = vmatmul.mubr.f32.gmra.mrb[0].mxu0 %v1460
    %v1568 = vpop.f32.mrb[0].mxu0
    %v1569 = vadd.f32 %v1434, %v1568
    %v1570 = vpop.f32.mrb[0].mxu0
    %1571 = vdwg.mxu0
    %v1572 = vmul.f32 %v1529, 0.8
    %v1573 = vmul.f32 %v1534, 0.8
    %v1574 = vmul.f32 %v1539, 0.8
    %v1575 = vmul.f32 %v1544, 0.8
    %v1576 = vmul.f32 %v1549, 0.8
    %v1577 = vmul.f32 %v1554, 0.8
    %v1578 = vmul.f32 %v1559, 0.8
    %v1579 = vmul.f32 %v1564, 0.8
    %v1580 = vmul.f32 %v1569, 0.8
    %v1581 = vmul.f32 %v568, 0.2
    %v1582 = vmul.f32 %v569, 0.2
    %v1583 = vmul.f32 %v570, 0.2
    %v1584 = vmul.f32 %v571, 0.2
    %v1585 = vmul.f32 %v572, 0.2
    %v1586 = vmul.f32 %v573, 0.2
    %v1587 = vmul.f32 %v574, 0.2
    %v1588 = vmul.f32 %v575, 0.2
    %v1589 = vmul.f32 %v576, 0.2
    %v1590 = vadd.f32 %v1572, %v1581
    %v1591 = vadd.f32 %v1573, %v1582
    %v1592 = vadd.f32 %v1574, %v1583
    %v1593 = vadd.f32 %v1575, %v1584
    %v1594 = vadd.f32 %v1576, %v1585
    %v1595 = vadd.f32 %v1577, %v1586
    %v1596 = vadd.f32 %v1578, %v1587
    %v1597 = vadd.f32 %v1579, %v1588
    %v1598 = vadd.f32 %v1580, %v1589
    %s1599 = scalar_lea.vmem [#allocation5], 32
    %v1600 = vld [vmem:[%s1599] sm:$0xff]
    %v1601 = vld [vmem:[%s1599 + $0x8] sm:$0xff]
    %v1602 = vld [vmem:[%s1599 + $0x10] sm:$0xff]
    %v1603 = vld [vmem:[%s1599 + $0x18] sm:$0xff]
    %1605 = vrot.lane.b32.xlu0 %v1434, 96
    %v1606 = vpop.permute.xlu0 %1605
    %v1609 = vsel %vm158, %v1590, 0
    %v1612 = vsel %vm158, %v1591, 0
    %v1615 = vsel %vm158, %v1592, 0
    %v1618 = vsel %vm158, %v1593, 0
    %v1621 = vsel %vm158, %v1594, 0
    %v1624 = vsel %vm158, %v1595, 0
    %v1627 = vsel %vm158, %v1596, 0
    %v1630 = vsel %vm158, %v1597, 0
    %v1633 = vsel %vm158, %v1598, 0
    %1635 = vmatprep.subr.mxu0 0.0
    %1636 = vmatpush1.msra.mxu0 %v1600
    %1637 = vmatprep.subr.mxu0 0.0
    %1638 = vmatpush1.msra.mxu0 %v1601
    %1639 = vmatprep.subr.mxu0 0.0
    %1640 = vmatpush1.msra.mxu0 %v1602
    %1641 = vmatprep.subr.mxu0 0.0
    %1642 = vmatpush1.msra.mxu0 %v1603
    %1643 = vmatprep.subr.mxu0 0.0
    %1644 = vmatpush1.msra.mxu0 0.0
    %1645 = vmatprep.subr.mxu0 0.0
    %1646 = vmatpush1.msra.mxu0 0.0
    %1647 = vmatprep.subr.mxu0 0.0
    %1648 = vmatpush1.msra.mxu0 0.0
    %1649 = vmatprep.subr.mxu0 0.0
    %1650 = vmatpush1.msra.mxu0 0.0
    %1651 = vmatprep.subr.mxu0 0.0
    %1652 = vmatpush1.msra.mxu0 0.0
    %1653 = vmatprep.subr.mxu0 0.0
    %1654 = vmatpush1.msra.mxu0 0.0
    %1655 = vmatprep.subr.mxu0 0.0
    %1656 = vmatpush1.msra.mxu0 0.0
    %1657 = vmatprep.subr.mxu0 0.0
    %1658 = vmatpush1.msra.mxu0 0.0
    %1659 = vmatprep.subr.mxu0 0.0
    %1660 = vmatpush1.msra.mxu0 0.0
    %1661 = vmatprep.subr.mxu0 0.0
    %1662 = vmatpush1.msra.mxu0 0.0
    %1663 = vmatprep.subr.mxu0 0.0
    %1664 = vmatpush1.msra.mxu0 0.0
    %1665 = vmatprep.subr.mxu0 0.0
    %1666 = vmatpush1.msra.mxu0 0.0
    %1667 = vmatprep.subr.mxu0 0.0
    %1668 = vmatpush1.msra.mxu0 0.0
    %1669 = vmatprep.subr.mxu0 0.0
    %1670 = vmatpush1.msra.mxu0 0.0
    %1671 = vmatprep.subr.mxu0 0.0
    %1672 = vmatpush1.msra.mxu0 0.0
    %1673 = vmatprep.subr.mxu0 0.0
    %1674 = vmatpush1.msra.mxu0 0.0
    %1675 = vmatprep.subr.mxu0 0.0
    %1676 = vmatpush1.msra.mxu0 0.0
    %1677 = vmatprep.subr.mxu0 0.0
    %1678 = vmatpush1.msra.mxu0 0.0
    %1679 = vmatprep.subr.mxu0 0.0
    %1680 = vmatpush1.msra.mxu0 0.0
    %1681 = vmatprep.subr.mxu0 0.0
    %1682 = vmatpush1.msra.mxu0 0.0
    %1683 = vmatprep.subr.mxu0 0.0
    %1684 = vmatpush1.msra.mxu0 0.0
    %1685 = vmatprep.subr.mxu0 0.0
    %1686 = vmatpush1.msra.mxu0 0.0
    %1687 = vmatprep.subr.mxu0 0.0
    %1688 = vmatpush1.msra.mxu0 0.0
    %1689 = vmatprep.subr.mxu0 0.0
    %1690 = vmatpush1.msra.mxu0 0.0
    %1691 = vmatprep.subr.mxu0 0.0
    %1692 = vmatpush1.msra.mxu0 0.0
    %1693 = vmatprep.subr.mxu0 0.0
    %1694 = vmatpush1.msra.mxu0 0.0
    %1695 = vmatprep.subr.mxu0 0.0
    %1696 = vmatpush1.msra.mxu0 0.0
    %1697 = vmatprep.subr.mxu0 0.0
    %1698 = vmatpush1.msra.mxu0 0.0
    %1699 = vmatprep.mubr.f32.mxu0 0.0
    %1700 = vmatmul.mubr.f32.gmra.mrb[0].mxu0 %v1609
    %v1701 = vpop.f32.mrb[0].mxu0
    %v1702 = vadd.f32 %v1606, %v1701
    %v1703 = vpop.f32.mrb[0].mxu0
    %1704 = vmatprep.mubr.f32.mxu0 0.0
    %1705 = vmatmul.mubr.f32.gmra.mrb[0].mxu0 %v1612
    %v1706 = vpop.f32.mrb[0].mxu0
    %v1707 = vadd.f32 %v1606, %v1706
    %v1708 = vpop.f32.mrb[0].mxu0
    %1709 = vmatprep.mubr.f32.mxu0 0.0
    %1710 = vmatmul.mubr.f32.gmra.mrb[0].mxu0 %v1615
    %v1711 = vpop.f32.mrb[0].mxu0
    %v1712 = vadd.f32 %v1606, %v1711
    %v1713 = vpop.f32.mrb[0].mxu0
    %1714 = vmatprep.mubr.f32.mxu0 0.0
    %1715 = vmatmul.mubr.f32.gmra.mrb[0].mxu0 %v1618
    %v1716 = vpop.f32.mrb[0].mxu0
    %v1717 = vadd.f32 %v1606, %v1716
    %v1718 = vpop.f32.mrb[0].mxu0
    %1719 = vmatprep.mubr.f32.mxu0 0.0
    %1720 = vmatmul.mubr.f32.gmra.mrb[0].mxu0 %v1621
    %v1721 = vpop.f32.mrb[0].mxu0
    %v1722 = vadd.f32 %v1606, %v1721
    %v1723 = vpop.f32.mrb[0].mxu0
    %1724 = vmatprep.mubr.f32.mxu0 0.0
    %1725 = vmatmul.mubr.f32.gmra.mrb[0].mxu0 %v1624
    %v1726 = vpop.f32.mrb[0].mxu0
    %v1727 = vadd.f32 %v1606, %v1726
    %v1728 = vpop.f32.mrb[0].mxu0
    %1729 = vmatprep.mubr.f32.mxu0 0.0
    %1730 = vmatmul.mubr.f32.gmra.mrb[0].mxu0 %v1627
    %v1731 = vpop.f32.mrb[0].mxu0
    %v1732 = vadd.f32 %v1606, %v1731
    %v1733 = vpop.f32.mrb[0].mxu0
    %1734 = vmatprep.mubr.f32.mxu0 0.0
    %1735 = vmatmul.mubr.f32.gmra.mrb[0].mxu0 %v1630
    %v1736 = vpop.f32.mrb[0].mxu0
    %v1737 = vadd.f32 %v1606, %v1736
    %v1738 = vpop.f32.mrb[0].mxu0
    %1739 = vmatprep.mubr.f32.mxu0 0.0
    %1740 = vmatmul.mubr.f32.gmra.mrb[0].mxu0 %v1633
    %v1741 = vpop.f32.mrb[0].mxu0
    %v1742 = vadd.f32 %v1606, %v1741
    %v1743 = vpop.f32.mrb[0].mxu0
    %1744 = vdwg.mxu0
    %v1745 = vxor.u32 %v1702, 2147483648
    %v1746 = vxor.u32 %v1707, 2147483648
    %v1747 = vxor.u32 %v1712, 2147483648
    %v1748 = vxor.u32 %v1717, 2147483648
    %v1749 = vxor.u32 %v1722, 2147483648
    %v1750 = vxor.u32 %v1727, 2147483648
    %v1751 = vxor.u32 %v1732, 2147483648
    %v1752 = vxor.u32 %v1737, 2147483648
    %v1753 = vxor.u32 %v1742, 2147483648
    %v1754 = vmul.f32 %v1745, 1.442695
    %v1755 = vpow.pop %v1754
    %v1756 = vmul.f32 %v1746, 1.442695
    %v1757 = vpow.pop %v1756
    %v1758 = vmul.f32 %v1747, 1.442695
    %v1759 = vpow.pop %v1758
    %v1760 = vmul.f32 %v1748, 1.442695
    %v1761 = vpow.pop %v1760
    %v1762 = vmul.f32 %v1749, 1.442695
    %v1763 = vpow.pop %v1762
    %v1764 = vmul.f32 %v1750, 1.442695
    %v1765 = vpow.pop %v1764
    %v1766 = vmul.f32 %v1751, 1.442695
    %v1767 = vpow.pop %v1766
    %v1768 = vmul.f32 %v1752, 1.442695
    %v1769 = vpow.pop %v1768
    %v1770 = vmul.f32 %v1753, 1.442695
    %v1771 = vpow.pop %v1770
    %v1772 = vadd.f32 %v1755, 1.0
    %v1773 = vadd.f32 %v1757, 1.0
    %v1774 = vadd.f32 %v1759, 1.0
    %v1775 = vadd.f32 %v1761, 1.0
    %v1776 = vadd.f32 %v1763, 1.0
    %v1777 = vadd.f32 %v1765, 1.0
    %v1778 = vadd.f32 %v1767, 1.0
    %v1779 = vadd.f32 %v1769, 1.0
    %v1780 = vadd.f32 %v1771, 1.0
    %v1781 = vrcp.pop %v1772
    %v1782 = vmul.f32 1.0, %v1781
    %v1783 = vrcp.pop %v1773
    %v1784 = vmul.f32 1.0, %v1783
    %v1785 = vrcp.pop %v1774
    %v1786 = vmul.f32 1.0, %v1785
    %v1787 = vrcp.pop %v1775
    %v1788 = vmul.f32 1.0, %v1787
    %v1789 = vrcp.pop %v1776
    %v1790 = vmul.f32 1.0, %v1789
    %v1791 = vrcp.pop %v1777
    %v1792 = vmul.f32 1.0, %v1791
    %v1793 = vrcp.pop %v1778
    %v1794 = vmul.f32 1.0, %v1793
    %v1795 = vrcp.pop %v1779
    %v1796 = vmul.f32 1.0, %v1795
    %v1797 = vrcp.pop %v1780
    %v1798 = vmul.f32 1.0, %v1797
    %v1799 = vmul.f32 %v1782, %v1590
    %v1800 = vmul.f32 %v1784, %v1591
    %v1801 = vmul.f32 %v1786, %v1592
    %v1802 = vmul.f32 %v1788, %v1593
    %v1803 = vmul.f32 %v1790, %v1594
    %v1804 = vmul.f32 %v1792, %v1595
    %v1805 = vmul.f32 %v1794, %v1596
    %v1806 = vmul.f32 %v1796, %v1597
    %v1807 = vmul.f32 %v1798, %v1598
    %v1808 = vmul.f32 %v1799, 0.5
    %v1809 = vmul.f32 %v1800, 0.5
    %v1810 = vmul.f32 %v1801, 0.5
    %v1811 = vmul.f32 %v1802, 0.5
    %v1812 = vmul.f32 %v1803, 0.5
    %v1813 = vmul.f32 %v1804, 0.5
    %v1814 = vmul.f32 %v1805, 0.5
    %v1815 = vmul.f32 %v1806, 0.5
    %v1816 = vmul.f32 %v1807, 0.5
    %v1817 = vmul.f32 %v1590, 0.5
    %v1818 = vmul.f32 %v1591, 0.5
    %v1819 = vmul.f32 %v1592, 0.5
    %v1820 = vmul.f32 %v1593, 0.5
    %v1821 = vmul.f32 %v1594, 0.5
    %v1822 = vmul.f32 %v1595, 0.5
    %v1823 = vmul.f32 %v1596, 0.5
    %v1824 = vmul.f32 %v1597, 0.5
    %v1825 = vmul.f32 %v1598, 0.5
    %v1826 = vadd.f32 %v1808, %v1817
    %v1827 = vadd.f32 %v1809, %v1818
    %v1828 = vadd.f32 %v1810, %v1819
    %v1829 = vadd.f32 %v1811, %v1820
    %v1830 = vadd.f32 %v1812, %v1821
    %v1831 = vadd.f32 %v1813, %v1822
    %v1832 = vadd.f32 %v1814, %v1823
    %v1833 = vadd.f32 %v1815, %v1824
    %v1834 = vadd.f32 %v1816, %v1825
    %1835 = vst.msk [vmem:[#allocation8] sm:$0xff] %vm158, %v1826
    %1836 = vst.msk [vmem:[#allocation8 + $0x8] sm:$0xff] %vm158, %v1827
    %1837 = vst.msk [vmem:[#allocation8 + $0x10] sm:$0xff] %vm158, %v1828
    %1838 = vst.msk [vmem:[#allocation8 + $0x18] sm:$0xff] %vm158, %v1829
    %1839 = vst.msk [vmem:[#allocation8 + $0x20] sm:$0xff] %vm158, %v1830
    %1840 = vst.msk [vmem:[#allocation8 + $0x28] sm:$0xff] %vm158, %v1831
    %1841 = vst.msk [vmem:[#allocation8 + $0x30] sm:$0xff] %vm158, %v1832
    %1842 = vst.msk [vmem:[#allocation8 + $0x38] sm:$0xff] %vm158, %v1833
    %1843 = vst.msk [vmem:[#allocation8 + $0x40] sm:$0xff] %vm158, %v1834
    %v1844 = vadd.f32 %v1801, %v1804
    %v1845 = vadd.f32 %v1844, %v1807
    %1846 = vst.msk [vmem:[#allocation7] sm:$0xff] %vm158, %v1845
    // Predicated region
    $region34: #{tpu_custom_call.1} parent=1 // pred_check
      _
    $region35: #{tpu_custom_call.1} parent=1 // pred_check_branch
      %1848 = sbr.rel (0) target = $region37
    $region36: #{tpu_custom_call.1} parent=1 // pred_region
      %s1850 = ssub.s32 128, 128
      %1851 = vsyncadd [#allocation4], %s1850
      %s1853 = sshll.u32 [#allocation7], 4
      %s1854 = int_to_ptr.vmem [resolvable:$true] %s1853
      %1856 = dma.vmem_to_hbm [thread:$0]  %s1854, 128, %s6, [#allocation4]
    $region37: #{tpu_custom_call.1} parent=1 // pred_fallthru
      _
    // Predicated region
    $region38: #{tpu_custom_call.1} parent=1 // pred_check
      _
    $region39: #{tpu_custom_call.1} parent=1 // pred_check_branch
      %1858 = sbr.rel (0) target = $region41
    $region40: #{tpu_custom_call.1} parent=1 // pred_region
      %s1860 = ssub.s32 1152, 1152
      %1861 = vsyncadd [#allocation9], %s1860
      %s1862 = sshll.u32 [#allocation8], 4
      %s1863 = int_to_ptr.vmem [resolvable:$true] %s1862
      %1868 = dma.vmem_to_hbm [thread:$0]  %s1863, 1152, %s7, [#allocation9], 128, 128, 8
    $region41: #{tpu_custom_call.1} parent=1 // pred_fallthru
      _
    // Predicated region
    $region42: #{tpu_custom_call.1} parent=1 // pred_check
      _
    $region43: #{tpu_custom_call.1} parent=1 // pred_check_branch
      %1870 = sbr.rel (0) target = $region45
    $region44: #{tpu_custom_call.1} parent=1 // pred_region
      %1871 = dma.done [#allocation4], 128
    $region45: #{tpu_custom_call.1} parent=1 // pred_fallthru
      _
    // Predicated region
    $region46: #{tpu_custom_call.1} parent=1 // pred_check
      _
    $region47: #{tpu_custom_call.1} parent=1 // pred_check_branch
      %1873 = sbr.rel (0) target = $region49
    $region48: #{tpu_custom_call.1} parent=1 // pred_region
      %1874 = dma.done [#allocation9], 1152
    $region49: #{tpu_custom_call.1} parent=1 // pred_fallthru
      _
    %1875 = vsyncpa [#allocation3], 1
    %1876 = vsyncpa [#allocation6], 1
    %1877 = vsyncpa [#allocation4], 1
    %1878 = vsyncpa [#allocation9], 1

</llo_original>
